<compile_context>
chip_gen: v7x
topology: tpu7x:2x2x1
jax: 0.10.0
libtpu: 0.0.40
codegen_flags: <defaults>
</compile_context>

<pallas_src>
import functools

import jax
import jax.numpy as jnp
import numpy as np
from jax.experimental import pallas as pl
from jax.experimental.pallas import tpu as pltpu

_NUM_CATEGORIES = 6  # same_sample, same_class, diff_class, stoquery, querytos, query


# ----------------------------------------------------------------------------
# Pallas kernel: one (Bt, Sp, Dp) batch tile per grid step.
# ----------------------------------------------------------------------------
def _vwa_kernel(q_ref, k_ref, v_ref, sel_ref, w_ref, out_ref, attn_ref,
                *, inv_temperature, s_valid):
    # q/k/v_ref: (Bt, Sp, Dp);  sel_ref: (Sp, Sp) int32;  w_ref: (8, Dp)
    q = q_ref[...]                                    # (Bt, Sp, Dp) f32
    k = k_ref[...]
    v = v_ref[...]
    bt, sp, dp = q.shape

    # --- scaled dot-product scores on the MXU (contract on D, no transpose) ---
    scores = jnp.einsum("bid,bjd->bij", q, k,
                        preferred_element_type=jnp.float32)           # (Bt, Sp, Sp)
    scores = scores * inv_temperature

    # --- mask padded key columns so they get zero probability ---
    col = jax.lax.broadcasted_iota(jnp.int32, (sp, sp), 1)
    scores = jnp.where((col < s_valid)[None], scores, -jnp.inf)

    # --- numerically stable softmax along the last axis (torch dim=2) ---
    m = jnp.max(scores, axis=-1, keepdims=True)
    e = jnp.exp(scores - m)
    denom = jnp.sum(e, axis=-1, keepdims=True)
    r = pl.reciprocal(denom, approx=True)             # EUP slot
    r = r * (2.0 - denom * r)                         # one Newton step -> f32 accuracy
    attn = e * r                                      # (Bt, Sp, Sp)
    attn_ref[...] = attn.astype(attn_ref.dtype)

    # --- weighted value aggregation using the 6-vector structure ---
    # out[b,i,d] = sum_c w_c[d] * sum_j (attn[b,i,j] * [sel[i,j]==c]) * v[b,j,d]
    sel = sel_ref[...]                                # (Sp, Sp) int32
    wt = w_ref[...]                                   # (8, Dp)
    acc = jnp.zeros((bt, sp, dp), jnp.float32)
    for c in range(_NUM_CATEGORIES):
        mask_c = (sel == c).astype(jnp.float32)       # (Sp, Sp)
        pa = attn * mask_c[None]                      # (Bt, Sp, Sp)
        ctx = jnp.einsum("bij,bjd->bid", pa, v,
                         preferred_element_type=jnp.float32)          # MXU
        acc = acc + ctx * wt[c][None, None, :]
    out_ref[...] = acc.astype(out_ref.dtype)


# ----------------------------------------------------------------------------
# Wrapper: padding, block sizing, pallas_call.
# ----------------------------------------------------------------------------
def _round_up(x, m):
    return ((x + m - 1) // m) * m


def _pick_block_b(B, Sp, Dp):
    """Largest batch tile that keeps the per-step footprint modest and, when
    B > 1, leaves >= 2 grid steps (v7x has 2 TensorCores)."""
    best = 1
    for cand in range(1, B + 1):
        if B % cand:
            continue
        footprint = 4 * cand * (4 * Sp * Dp + Sp * Sp)   # q,k,v,out + attn (f32)
        if footprint > (4 << 20):
            continue
        if B > 1 and B // cand < 2:
            continue
        best = cand
    return best


def _vmem_limit_bytes(bt, sp, dp):
    per_step = 4 * (bt * (4 * sp * dp + sp * sp) + sp * sp + 8 * dp)
    limit = 4 * per_step + (16 << 20)        # double-buffering + compute temporaries
    return int(min(max(limit, 32 << 20), 48 << 20))   # portable on v7x (64 MiB VMEM)


def vector_weighted_attention(q, k, v, sel_map, attn_weight, temperature):
    """q, k, v: (B, S, D) f32; sel_map: (S, S) int32 in [0,6); attn_weight: (6, D)."""
    B, S, D = q.shape
    Sp = _round_up(S, 128)        # lane-dense attn stores + MXU-aligned contraction
    Dp = _round_up(D, 128)        # lane-dense out stores
    Bt = _pick_block_b(B, Sp, Dp)

    qp = jnp.pad(q, ((0, 0), (0, Sp - S), (0, Dp - D)))
    kp = jnp.pad(k, ((0, 0), (0, Sp - S), (0, Dp - D)))
    vp = jnp.pad(v, ((0, 0), (0, Sp - S), (0, Dp - D)))
    # padded sel entries get a non-existent category -> zero contribution
    selp = jnp.pad(sel_map.astype(jnp.int32),
                   ((0, Sp - S), (0, Sp - S)), constant_values=_NUM_CATEGORIES)
    # pad (6, D) weight table to sublane/lane friendly (8, Dp)
    wtab = jnp.pad(attn_weight.astype(jnp.float32),
                   ((0, 8 - _NUM_CATEGORIES), (0, Dp - D)))

    kernel = functools.partial(
        _vwa_kernel,
        inv_temperature=float(1.0 / temperature),
        s_valid=int(S),
    )

    out_p, attn_p = pl.pallas_call(
        kernel,
        out_shape=(
            jax.ShapeDtypeStruct((B, Sp, Dp), jnp.float32),
            jax.ShapeDtypeStruct((B, Sp, Sp), jnp.float32),
        ),
        grid_spec=pltpu.PrefetchScalarGridSpec(
            num_scalar_prefetch=0,
            grid=(B // Bt,),
            in_specs=[
                pl.BlockSpec((Bt, Sp, Dp), lambda b: (b, 0, 0)),   # q
                pl.BlockSpec((Bt, Sp, Dp), lambda b: (b, 0, 0)),   # k
                pl.BlockSpec((Bt, Sp, Dp), lambda b: (b, 0, 0)),   # v
                pl.BlockSpec((Sp, Sp), lambda b: (0, 0)),          # sel map (shared)
                pl.BlockSpec((8, Dp), lambda b: (0, 0)),           # weight table (shared)
            ],
            out_specs=[
                pl.BlockSpec((Bt, Sp, Dp), lambda b: (b, 0, 0)),   # output
                pl.BlockSpec((Bt, Sp, Sp), lambda b: (b, 0, 0)),   # attn
            ],
        ),
        compiler_params=pltpu.CompilerParams(
            dimension_semantics=("parallel",),
            vmem_limit_bytes=_vmem_limit_bytes(Bt, Sp, Dp),
        ),
    )(qp, kp, vp, selp, wtab)

    return out_p[:, :S, :D], attn_p[:, :S, :S]


# ----------------------------------------------------------------------------
# Static selection-map construction (mirrors the torch get_attn_weight loop).
# ----------------------------------------------------------------------------
def build_sel_map(N, K, query=True):
    NK = N * K
    S = NK + 1
    sel = np.zeros((S, S), dtype=np.int32)
    for row in range(NK):
        sel[row, :] = 2                                               # w_diff_class
        sel[row, -1] = 3                                              # w_stoquery
        lo = int(np.floor(row / K) * K)
        hi = int(np.ceil((row + 1) / K) * K)
        sel[row, lo:hi] = 1                                           # w_same_class
        sel[row, row] = 0                                             # w_same_sample
    sel[-1, :-1] = 4                                                  # w_querytos
    sel[-1, -1] = 5                                                   # w_query
    if not query:
        sel = sel[:-1, :-1]
    return jnp.asarray(sel)


def build_attn_weight_param(key, hidden_size):
    # torch.nn.init.uniform_(attn_weight, a=-sqrt(3), b=+sqrt(3))
    bound = float(np.sqrt(6 / 2))
    return jax.random.uniform(
        key, (_NUM_CATEGORIES, hidden_size), dtype=jnp.float32,
        minval=-bound, maxval=bound,
    )


# ----------------------------------------------------------------------------
# Pure-JAX reference for validation.
# ----------------------------------------------------------------------------
def reference_forward(q, k, v, sel_map, attn_weight, temperature):
    weights = attn_weight[sel_map]                                    # (S, S, D)
    scores = jnp.einsum("bid,bjd->bij", q, k) / temperature
    attn = jax.nn.softmax(scores, axis=2)
    out = jnp.einsum("bij,ijd,bjd->bid", attn, weights, v)
    return out, attn


if __name__ == "__main__":
    # Small, module-consistent shapes: N classes, K shots, +1 query sample.
    N, K = 2, 4
    hidden = 32
    seq = N * K + 1              # 9
    batch = 2
    temperature = float(np.sqrt(hidden))

    key = jax.random.PRNGKey(0)
    kq, kk, kv, kw = jax.random.split(key, 4)
    q = jax.random.normal(kq, (batch, seq, hidden), dtype=jnp.float32)
    k = jax.random.normal(kk, (batch, seq, hidden), dtype=jnp.float32)
    v = jax.random.normal(kv, (batch, seq, hidden), dtype=jnp.float32)

    attn_weight_param = build_attn_weight_param(kw, hidden)           # (6, hidden)
    sel_map = build_sel_map(N, K, query=True)                         # (S, S) int32

    out, attn = vector_weighted_attention(q, k, v, sel_map,
                                          attn_weight_param, temperature)
    jax.block_until_ready(out)
    jax.block_until_ready(attn)

    out_ref, attn_ref = reference_forward(q, k, v, sel_map,
                                          attn_weight_param, temperature)
    np.testing.assert_allclose(np.asarray(attn), np.asarray(attn_ref),
                               rtol=1e-5, atol=1e-5)
    np.testing.assert_allclose(np.asarray(out), np.asarray(out_ref),
                               rtol=1e-5, atol=1e-5)

    print("KERNEL_OK")
</pallas_src>

<mosaic_0001>
module attributes {stable_mosaic.version = 11 : i64} {
  func.func @_vwa_kernel(%arg0: i32, %arg1: memref<1x128x128xf32, #tpu.memory_space<vmem>>, %arg2: memref<1x128x128xf32, #tpu.memory_space<vmem>>, %arg3: memref<1x128x128xf32, #tpu.memory_space<vmem>>, %arg4: memref<128x128xi32, #tpu.memory_space<vmem>>, %arg5: memref<8x128xf32, #tpu.memory_space<vmem>>, %arg6: memref<1x128x128xf32, #tpu.memory_space<vmem>>, %arg7: memref<1x128x128xf32, #tpu.memory_space<vmem>>) attributes {dimension_semantics = [#tpu.dimension_semantics<parallel>], iteration_bounds = array<i64: 2>, scalar_prefetch = 0 : i64, scratch_operands = 0 : i64, tpu.core_type = #tpu.core_type<tc>, window_params = [{transform_indices = @transform_0, window_bounds = array<i64: 1, 128, 128>}, {transform_indices = @transform_1, window_bounds = array<i64: 1, 128, 128>}, {transform_indices = @transform_2, window_bounds = array<i64: 1, 128, 128>}, {pipeline_mode = #tpu.pipeline_mode<synchronous>, transform_indices = @transform_3, window_bounds = array<i64: 128, 128>}, {pipeline_mode = #tpu.pipeline_mode<synchronous>, transform_indices = @transform_4, window_bounds = array<i64: 8, 128>}, {transform_indices = @transform_5, window_bounds = array<i64: 1, 128, 128>}, {transform_indices = @transform_6, window_bounds = array<i64: 1, 128, 128>}]} {
    %c0 = arith.constant 0 : index
    %c0_0 = arith.constant 0 : index
    %c0_1 = arith.constant 0 : index
    %0 = vector.load %arg1[%c0, %c0_0, %c0_1] : memref<1x128x128xf32, #tpu.memory_space<vmem>>, vector<1x128x128xf32>
    %c0_2 = arith.constant 0 : index
    %c0_3 = arith.constant 0 : index
    %c0_4 = arith.constant 0 : index
    %1 = vector.load %arg2[%c0_2, %c0_3, %c0_4] : memref<1x128x128xf32, #tpu.memory_space<vmem>>, vector<1x128x128xf32>
    %c0_5 = arith.constant 0 : index
    %c0_6 = arith.constant 0 : index
    %c0_7 = arith.constant 0 : index
    %2 = vector.load %arg3[%c0_5, %c0_6, %c0_7] : memref<1x128x128xf32, #tpu.memory_space<vmem>>, vector<1x128x128xf32>
    "tpu.trace_start"() <{level = 10 : i32, message = "bid,bjd->bij"}> : () -> ()
    %cst = arith.constant dense<0.000000e+00> : vector<1x128x128xf32>
    %3 = tpu.matmul %0, %1, %cst {dimension_numbers = #tpu.dot_dimension_numbers<[2], [2], [1], [1], [0, 0, 0, 1, 1, 1], [0], [0]>} : vector<1x128x128xf32>, vector<1x128x128xf32>, vector<1x128x128xf32> -> vector<1x128x128xf32>
    "tpu.trace_stop"() : () -> ()
    %cst_8 = arith.constant 0.176776692 : f32
    %4 = vector.broadcast %cst_8 : f32 to vector<1x128x128xf32>
    %5 = arith.mulf %3, %4 : vector<1x128x128xf32>
    %6 = tpu.iota {dimensions = array<i32: 1>} : vector<128x128xi32>
    %c9_i32 = arith.constant 9 : i32
    %7 = vector.broadcast %c9_i32 : i32 to vector<128x128xi32>
    %8 = arith.cmpi slt, %6, %7 : vector<128x128xi32>
    %9 = vector.shape_cast %8 : vector<128x128xi1> to vector<1x128x128xi1>
    %cst_9 = arith.constant 0xFF800000 : f32
    %10 = vector.broadcast %cst_9 : f32 to vector<1x128x128xf32>
    %11 = arith.select %9, %5, %10 : vector<1x128x128xi1>, vector<1x128x128xf32>
    %cst_10 = arith.constant dense<0xFF800000> : vector<1x128xf32>
    %12 = vector.multi_reduction <maximumf>, %11, %cst_10 [2] : vector<1x128x128xf32> to vector<1x128xf32>
    %13 = vector.shape_cast %12 : vector<1x128xf32> to vector<1x128x1xf32>
    %14 = vector.broadcast %13 : vector<1x128x1xf32> to vector<1x128x128xf32>
    %15 = arith.subf %11, %14 : vector<1x128x128xf32>
    %16 = math.exp %15 : vector<1x128x128xf32>
    %cst_11 = arith.constant dense<0.000000e+00> : vector<1x128xf32>
    %17 = vector.multi_reduction <add>, %16, %cst_11 [2] : vector<1x128x128xf32> to vector<1x128xf32>
    %18 = vector.shape_cast %17 : vector<1x128xf32> to vector<1x128x1xf32>
    %19 = tpu.reciprocal %18 {approx = true} : vector<1x128x1xf32> -> vector<1x128x1xf32>
    %20 = arith.mulf %18, %19 : vector<1x128x1xf32>
    %cst_12 = arith.constant 2.000000e+00 : f32
    %21 = vector.broadcast %cst_12 : f32 to vector<1x128x1xf32>
    %22 = arith.subf %21, %20 : vector<1x128x1xf32>
    %23 = arith.mulf %19, %22 : vector<1x128x1xf32>
    %24 = vector.broadcast %23 : vector<1x128x1xf32> to vector<1x128x128xf32>
    %25 = arith.mulf %16, %24 : vector<1x128x128xf32>
    %c0_13 = arith.constant 0 : index
    %c0_14 = arith.constant 0 : index
    %c0_15 = arith.constant 0 : index
    %26 = vector.load %arg7[%c0_13, %c0_14, %c0_15] : memref<1x128x128xf32, #tpu.memory_space<vmem>>, vector<1x128x128xf32>
    tpu.vector_store %arg7[%c0_13, %c0_14, %c0_15], %25 {strides = array<i32>} : memref<1x128x128xf32, #tpu.memory_space<vmem>>, vector<1x128x128xf32>,
    %c0_16 = arith.constant 0 : index
    %c0_17 = arith.constant 0 : index
    %27 = vector.load %arg4[%c0_16, %c0_17] : memref<128x128xi32, #tpu.memory_space<vmem>>, vector<128x128xi32>
    %c0_18 = arith.constant 0 : index
    %c0_19 = arith.constant 0 : index
    %28 = vector.load %arg5[%c0_18, %c0_19] : memref<8x128xf32, #tpu.memory_space<vmem>>, vector<8x128xf32>
    %cst_20 = arith.constant 0.000000e+00 : f32
    %29 = vector.broadcast %cst_20 : f32 to vector<1x128x128xf32>
    %c0_i32 = arith.constant 0 : i32
    %30 = vector.broadcast %c0_i32 : i32 to vector<128x128xi32>
    %31 = arith.cmpi eq, %27, %30 : vector<128x128xi32>
    %32 = arith.extui %31 : vector<128x128xi1> to vector<128x128xi32>
    %33 = arith.sitofp %32 : vector<128x128xi32> to vector<128x128xf32>
    %34 = vector.shape_cast %33 : vector<128x128xf32> to vector<1x128x128xf32>
    %35 = arith.mulf %25, %34 : vector<1x128x128xf32>
    "tpu.trace_start"() <{level = 10 : i32, message = "bij,bjd->bid"}> : () -> ()
    %cst_21 = arith.constant dense<0.000000e+00> : vector<1x128x128xf32>
    %36 = tpu.matmul %35, %2, %cst_21 {dimension_numbers = #tpu.dot_dimension_numbers<[2], [1], [1], [2], [0, 0, 0, 1, 1, 2], [0], [0]>} : vector<1x128x128xf32>, vector<1x128x128xf32>, vector<1x128x128xf32> -> vector<1x128x128xf32>
    "tpu.trace_stop"() : () -> ()
    %37 = vector.extract_strided_slice %28 {offsets = [0, 0], sizes = [1, 128], strides = [1, 1]} : vector<8x128xf32> to vector<1x128xf32>
    %38 = vector.shape_cast %37 : vector<1x128xf32> to vector<128xf32>
    %39 = vector.shape_cast %38 : vector<128xf32> to vector<1x1x128xf32>
    %40 = vector.broadcast %39 : vector<1x1x128xf32> to vector<1x128x128xf32>
    %41 = arith.mulf %36, %40 : vector<1x128x128xf32>
    %42 = arith.addf %29, %41 : vector<1x128x128xf32>
    %c1_i32 = arith.constant 1 : i32
    %43 = vector.broadcast %c1_i32 : i32 to vector<128x128xi32>
    %44 = arith.cmpi eq, %27, %43 : vector<128x128xi32>
    %45 = arith.extui %44 : vector<128x128xi1> to vector<128x128xi32>
    %46 = arith.sitofp %45 : vector<128x128xi32> to vector<128x128xf32>
    %47 = vector.shape_cast %46 : vector<128x128xf32> to vector<1x128x128xf32>
    %48 = arith.mulf %25, %47 : vector<1x128x128xf32>
    "tpu.trace_start"() <{level = 10 : i32, message = "bij,bjd->bid"}> : () -> ()
    %cst_22 = arith.constant dense<0.000000e+00> : vector<1x128x128xf32>
    %49 = tpu.matmul %48, %2, %cst_22 {dimension_numbers = #tpu.dot_dimension_numbers<[2], [1], [1], [2], [0, 0, 0, 1, 1, 2], [0], [0]>} : vector<1x128x128xf32>, vector<1x128x128xf32>, vector<1x128x128xf32> -> vector<1x128x128xf32>
    "tpu.trace_stop"() : () -> ()
    %50 = vector.extract_strided_slice %28 {offsets = [1, 0], sizes = [1, 128], strides = [1, 1]} : vector<8x128xf32> to vector<1x128xf32>
    %51 = vector.shape_cast %50 : vector<1x128xf32> to vector<128xf32>
    %52 = vector.shape_cast %51 : vector<128xf32> to vector<1x1x128xf32>
    %53 = vector.broadcast %52 : vector<1x1x128xf32> to vector<1x128x128xf32>
    %54 = arith.mulf %49, %53 : vector<1x128x128xf32>
    %55 = arith.addf %42, %54 : vector<1x128x128xf32>
    %c2_i32 = arith.constant 2 : i32
    %56 = vector.broadcast %c2_i32 : i32 to vector<128x128xi32>
    %57 = arith.cmpi eq, %27, %56 : vector<128x128xi32>
    %58 = arith.extui %57 : vector<128x128xi1> to vector<128x128xi32>
    %59 = arith.sitofp %58 : vector<128x128xi32> to vector<128x128xf32>
    %60 = vector.shape_cast %59 : vector<128x128xf32> to vector<1x128x128xf32>
    %61 = arith.mulf %25, %60 : vector<1x128x128xf32>
    "tpu.trace_start"() <{level = 10 : i32, message = "bij,bjd->bid"}> : () -> ()
    %cst_23 = arith.constant dense<0.000000e+00> : vector<1x128x128xf32>
    %62 = tpu.matmul %61, %2, %cst_23 {dimension_numbers = #tpu.dot_dimension_numbers<[2], [1], [1], [2], [0, 0, 0, 1, 1, 2], [0], [0]>} : vector<1x128x128xf32>, vector<1x128x128xf32>, vector<1x128x128xf32> -> vector<1x128x128xf32>
    "tpu.trace_stop"() : () -> ()
    %63 = vector.extract_strided_slice %28 {offsets = [2, 0], sizes = [1, 128], strides = [1, 1]} : vector<8x128xf32> to vector<1x128xf32>
    %64 = vector.shape_cast %63 : vector<1x128xf32> to vector<128xf32>
    %65 = vector.shape_cast %64 : vector<128xf32> to vector<1x1x128xf32>
    %66 = vector.broadcast %65 : vector<1x1x128xf32> to vector<1x128x128xf32>
    %67 = arith.mulf %62, %66 : vector<1x128x128xf32>
    %68 = arith.addf %55, %67 : vector<1x128x128xf32>
    %c3_i32 = arith.constant 3 : i32
    %69 = vector.broadcast %c3_i32 : i32 to vector<128x128xi32>
    %70 = arith.cmpi eq, %27, %69 : vector<128x128xi32>
    %71 = arith.extui %70 : vector<128x128xi1> to vector<128x128xi32>
    %72 = arith.sitofp %71 : vector<128x128xi32> to vector<128x128xf32>
    %73 = vector.shape_cast %72 : vector<128x128xf32> to vector<1x128x128xf32>
    %74 = arith.mulf %25, %73 : vector<1x128x128xf32>
    "tpu.trace_start"() <{level = 10 : i32, message = "bij,bjd->bid"}> : () -> ()
    %cst_24 = arith.constant dense<0.000000e+00> : vector<1x128x128xf32>
    %75 = tpu.matmul %74, %2, %cst_24 {dimension_numbers = #tpu.dot_dimension_numbers<[2], [1], [1], [2], [0, 0, 0, 1, 1, 2], [0], [0]>} : vector<1x128x128xf32>, vector<1x128x128xf32>, vector<1x128x128xf32> -> vector<1x128x128xf32>
    "tpu.trace_stop"() : () -> ()
    %76 = vector.extract_strided_slice %28 {offsets = [3, 0], sizes = [1, 128], strides = [1, 1]} : vector<8x128xf32> to vector<1x128xf32>
    %77 = vector.shape_cast %76 : vector<1x128xf32> to vector<128xf32>
    %78 = vector.shape_cast %77 : vector<128xf32> to vector<1x1x128xf32>
    %79 = vector.broadcast %78 : vector<1x1x128xf32> to vector<1x128x128xf32>
    %80 = arith.mulf %75, %79 : vector<1x128x128xf32>
    %81 = arith.addf %68, %80 : vector<1x128x128xf32>
    %c4_i32 = arith.constant 4 : i32
    %82 = vector.broadcast %c4_i32 : i32 to vector<128x128xi32>
    %83 = arith.cmpi eq, %27, %82 : vector<128x128xi32>
    %84 = arith.extui %83 : vector<128x128xi1> to vector<128x128xi32>
    %85 = arith.sitofp %84 : vector<128x128xi32> to vector<128x128xf32>
    %86 = vector.shape_cast %85 : vector<128x128xf32> to vector<1x128x128xf32>
    %87 = arith.mulf %25, %86 : vector<1x128x128xf32>
    "tpu.trace_start"() <{level = 10 : i32, message = "bij,bjd->bid"}> : () -> ()
    %cst_25 = arith.constant dense<0.000000e+00> : vector<1x128x128xf32>
    %88 = tpu.matmul %87, %2, %cst_25 {dimension_numbers = #tpu.dot_dimension_numbers<[2], [1], [1], [2], [0, 0, 0, 1, 1, 2], [0], [0]>} : vector<1x128x128xf32>, vector<1x128x128xf32>, vector<1x128x128xf32> -> vector<1x128x128xf32>
    "tpu.trace_stop"() : () -> ()
    %89 = vector.extract_strided_slice %28 {offsets = [4, 0], sizes = [1, 128], strides = [1, 1]} : vector<8x128xf32> to vector<1x128xf32>
    %90 = vector.shape_cast %89 : vector<1x128xf32> to vector<128xf32>
    %91 = vector.shape_cast %90 : vector<128xf32> to vector<1x1x128xf32>
    %92 = vector.broadcast %91 : vector<1x1x128xf32> to vector<1x128x128xf32>
    %93 = arith.mulf %88, %92 : vector<1x128x128xf32>
    %94 = arith.addf %81, %93 : vector<1x128x128xf32>
    %c5_i32 = arith.constant 5 : i32
    %95 = vector.broadcast %c5_i32 : i32 to vector<128x128xi32>
    %96 = arith.cmpi eq, %27, %95 : vector<128x128xi32>
    %97 = arith.extui %96 : vector<128x128xi1> to vector<128x128xi32>
    %98 = arith.sitofp %97 : vector<128x128xi32> to vector<128x128xf32>
    %99 = vector.shape_cast %98 : vector<128x128xf32> to vector<1x128x128xf32>
    %100 = arith.mulf %25, %99 : vector<1x128x128xf32>
    "tpu.trace_start"() <{level = 10 : i32, message = "bij,bjd->bid"}> : () -> ()
    %cst_26 = arith.constant dense<0.000000e+00> : vector<1x128x128xf32>
    %101 = tpu.matmul %100, %2, %cst_26 {dimension_numbers = #tpu.dot_dimension_numbers<[2], [1], [1], [2], [0, 0, 0, 1, 1, 2], [0], [0]>} : vector<1x128x128xf32>, vector<1x128x128xf32>, vector<1x128x128xf32> -> vector<1x128x128xf32>
    "tpu.trace_stop"() : () -> ()
    %102 = vector.extract_strided_slice %28 {offsets = [5, 0], sizes = [1, 128], strides = [1, 1]} : vector<8x128xf32> to vector<1x128xf32>
    %103 = vector.shape_cast %102 : vector<1x128xf32> to vector<128xf32>
    %104 = vector.shape_cast %103 : vector<128xf32> to vector<1x1x128xf32>
    %105 = vector.broadcast %104 : vector<1x1x128xf32> to vector<1x128x128xf32>
    %106 = arith.mulf %101, %105 : vector<1x128x128xf32>
    %107 = arith.addf %94, %106 : vector<1x128x128xf32>
    %c0_27 = arith.constant 0 : index
    %c0_28 = arith.constant 0 : index
    %c0_29 = arith.constant 0 : index
    %108 = vector.load %arg6[%c0_27, %c0_28, %c0_29] : memref<1x128x128xf32, #tpu.memory_space<vmem>>, vector<1x128x128xf32>
    tpu.vector_store %arg6[%c0_27, %c0_28, %c0_29], %107 {strides = array<i32>} : memref<1x128x128xf32, #tpu.memory_space<vmem>>, vector<1x128x128xf32>,
    return
  }
  func.func @transform_0(%arg0: i32) -> (i32, i32, i32) {
    %c0_i32 = arith.constant 0 : i32
    %c0_i32_0 = arith.constant 0 : i32
    %c0_i32_1 = arith.constant 0 : i32
    return %arg0, %c0_i32, %c0_i32_0 : i32, i32, i32
  }
  func.func @transform_1(%arg0: i32) -> (i32, i32, i32) {
    %c0_i32 = arith.constant 0 : i32
    %c0_i32_0 = arith.constant 0 : i32
    %c0_i32_1 = arith.constant 0 : i32
    return %arg0, %c0_i32, %c0_i32_0 : i32, i32, i32
  }
  func.func @transform_2(%arg0: i32) -> (i32, i32, i32) {
    %c0_i32 = arith.constant 0 : i32
    %c0_i32_0 = arith.constant 0 : i32
    %c0_i32_1 = arith.constant 0 : i32
    return %arg0, %c0_i32, %c0_i32_0 : i32, i32, i32
  }
  func.func @transform_3(%arg0: i32) -> (i32, i32) {
    %c0_i32 = arith.constant 0 : i32
    %c0_i32_0 = arith.constant 0 : i32
    %c0_i32_1 = arith.constant 0 : i32
    return %c0_i32, %c0_i32_0 : i32, i32
  }
  func.func @transform_4(%arg0: i32) -> (i32, i32) {
    %c0_i32 = arith.constant 0 : i32
    %c0_i32_0 = arith.constant 0 : i32
    %c0_i32_1 = arith.constant 0 : i32
    return %c0_i32, %c0_i32_0 : i32, i32
  }
  func.func @transform_5(%arg0: i32) -> (i32, i32, i32) {
    %c0_i32 = arith.constant 0 : i32
    %c0_i32_0 = arith.constant 0 : i32
    %c0_i32_1 = arith.constant 0 : i32
    return %arg0, %c0_i32, %c0_i32_0 : i32, i32, i32
  }
  func.func @transform_6(%arg0: i32) -> (i32, i32, i32) {
    %c0_i32 = arith.constant 0 : i32
    %c0_i32_0 = arith.constant 0 : i32
    %c0_i32_1 = arith.constant 0 : i32
    return %arg0, %c0_i32, %c0_i32_0 : i32, i32, i32
  }
}

</mosaic_0001>

<llo_original>
// kernel: tpu_custom_call.1
$region0: #{tpu_custom_call.1}
  #allocation0 [shape = 'u32[]', space=smem, size = 0x4, offset = 0x4, fixed_abs, tag = 'smem constant byte address 0x4 - core index']
  #allocation1 [shape = 'u32[144,128]{1,0:T(1,128)}', space=vmem, size = 0x12000, scoped, tag = 'internal scratch']
  %s0 = inlined_call_operand.hbm [shape: f32[2,128,128], index: 0, kind: input, shape index: {}]
  %s1 = inlined_call_operand.hbm [shape: f32[2,128,128], index: 1, kind: input, shape index: {}]
  %s2 = inlined_call_operand.hbm [shape: f32[2,128,128], index: 2, kind: input, shape index: {}]
  %s3 = inlined_call_operand.hbm [shape: s32[128,128], index: 3, kind: input, shape index: {}]
  %s4 = inlined_call_operand.vmem [shape: f32[8,128], index: 4, kind: input, shape index: {}]
  %s5 = inlined_call_operand.hbm [shape: f32[2,128,128], index: 5, kind: output, shape index: {0}]
  %s6 = inlined_call_operand.hbm [shape: f32[2,128,128], index: 6, kind: output, shape index: {1}]
  %7 = xla_tuple %s5, %s6
  %s8 = sld [smem:[#allocation0]]
  $region77: #{tpu_custom_call.1} parent=0
    _
  %s10 = ssub.s32 1, %s8
  %s11 = scalar_select 0, %s10, %s8
  $region1: #{tpu_custom_call.1} parent=0
    #allocation2 [shape = 'u8[131072]{0}', space=vmem, size = 0x20000, scoped, tag = 'input window, operand 0']
    #allocation3 [shape = 's32[2]{0}', space=sflag, size = 0x8, scoped, tag = 'scoped memory for tpu_custom_call.1']
    #allocation4 [shape = 's32[2]{0}', space=sflag, size = 0x8, scoped, tag = 'scoped memory for tpu_custom_call.1']
    #allocation5 [shape = 'u8[131072]{0}', space=vmem, size = 0x20000, scoped, tag = 'input window, operand 1']
    #allocation6 [shape = 's32[2]{0}', space=sflag, size = 0x8, scoped, tag = 'scoped memory for tpu_custom_call.1']
    #allocation7 [shape = 'u8[131072]{0}', space=vmem, size = 0x20000, scoped, tag = 'input window, operand 2']
    #allocation8 [shape = 'u8[65536]{0}', space=vmem, size = 0x10000, scoped, tag = 'input window, operand 3, single buffered']
    #allocation9 [shape = 's32[1]{0}', space=sflag, size = 0x4, scoped, tag = 'scoped memory for tpu_custom_call.1']
    #allocation10 [shape = 'u8[131072]{0}', space=vmem, size = 0x20000, scoped, tag = 'output window, operand 0']
    #allocation11 [shape = 'u8[131072]{0}', space=vmem, size = 0x20000, scoped, tag = 'output window, operand 1']
    #allocation12 [shape = 's32[2]{0}', space=sflag, size = 0x8, scoped, tag = 'scoped memory for tpu_custom_call.1']
    %12 = vsyncpa [#allocation3], 0
    %s13 = scalar_lea.sflag [#allocation3], 1
    %14 = vsyncpa %s13, 0
    %15 = vsyncpa [#allocation6], 0
    %s16 = scalar_lea.sflag [#allocation6], 1
    %17 = vsyncpa %s16, 0
    %18 = vsyncpa [#allocation9], 0
    %19 = vsyncpa [#allocation4], 0
    %s20 = scalar_lea.sflag [#allocation4], 1
    %21 = vsyncpa %s20, 0
    %22 = vsyncpa [#allocation12], 0
    %s23 = scalar_lea.sflag [#allocation12], 1
    %24 = vsyncpa %s23, 0
    loop: start=0, step=1, limit=4
    $region2: #{tpu_custom_call.1} parent=1 // loop_pre_header
      _
    $region3: #{tpu_custom_call.1} parent=1 // loop_header
      %s26 = sphi 0, %s30
      %p27 = scmp.ge.s32.totalorder %s26, 4
      %s36 = sphi 0, %s38
      %s39 = sphi 0, %s36
      %s40 = sphi 0, %s39
      %s56 = sphi 0, %s40
      %s62 = sphi 0, %s64
      %s65 = sphi 0, %s62
      %s66 = sphi 0, %s65
      %s82 = sphi 0, %s66
      %s88 = sphi 0, %s90
      %s91 = sphi 0, %s88
      %s92 = sphi 0, %s91
      %s108 = sphi 0, %s92
      %s112 = sphi 0, %s112
      %s114 = sphi 0, %s112
      %s115 = sphi 0, %s114
      %s129 = sphi 0, %s115
      %s133 = sphi 0, %s133
      %s135 = sphi 0, %s133
      %s136 = sphi 0, %s135
      %s150 = sphi 0, %s136
      %s156 = sphi 0, %s158
      %s159 = sphi 0, %s156
      %s160 = sphi 0, %s159
      %s176 = sphi 0, %s160
      %s182 = sphi 0, %s184
      %s185 = sphi 0, %s182
      %s186 = sphi 0, %s185
      %s202 = sphi 0, %s186
    $region4: #{tpu_custom_call.1} parent=1 // loop_header_branch
      %29 = sbr.rel (%p27) target = $region8
    $region5: #{tpu_custom_call.1} parent=1 // loop_body
      %s31 = ssub.s32 %s26, 1
      %s32 = ssub.s32 %s26, 2
      %s33 = sadd.s32 %s26, 1
      %s34 = ssub.s32 %s26, %s33
      %p35 = scmp.eq.s32.totalorder %s34, 0
      %s37 = sadd.s32 %s36, 1
      %s38 = scalar_select %p35, %s36, %s37
      %p41 = pneg %p35
      %p42 = scmp.eq.s32.totalorder %s26, 1
      %p43 = por %p41, %p42
      %p44 = scmp.ne.s32.totalorder %s36, %s39
      %p45 = scmp.eq.s32.totalorder %s26, 0
      %p46 = por %p44, %p45
      %p47 = scmp.ne.s32.totalorder %s36, %s39
      %p48 = scmp.eq.s32.totalorder %s31, 1
      %p49 = por %p47, %p48
      %p50 = scmp.ne.s32.totalorder %s39, %s40
      %p51 = scmp.eq.s32.totalorder %s31, 0
      %p52 = por %p50, %p51
      %p53 = scmp.ne.s32.totalorder %s39, %s40
      %p54 = scmp.eq.s32.totalorder %s32, 1
      %p55 = por %p53, %p54
      %p57 = scmp.ne.s32.totalorder %s40, %s56
      %p58 = scmp.eq.s32.totalorder %s32, 0
      %p59 = por %p57, %p58
      %s60 = ssub.s32 %s26, %s33
      %p61 = scmp.eq.s32.totalorder %s60, 0
      %s63 = sadd.s32 %s62, 1
      %s64 = scalar_select %p61, %s62, %s63
      %p67 = pneg %p61
      %p68 = scmp.eq.s32.totalorder %s26, 1
      %p69 = por %p67, %p68
      %p70 = scmp.ne.s32.totalorder %s62, %s65
      %p71 = scmp.eq.s32.totalorder %s26, 0
      %p72 = por %p70, %p71
      %p73 = scmp.ne.s32.totalorder %s62, %s65
      %p74 = scmp.eq.s32.totalorder %s31, 1
      %p75 = por %p73, %p74
      %p76 = scmp.ne.s32.totalorder %s65, %s66
      %p77 = scmp.eq.s32.totalorder %s31, 0
      %p78 = por %p76, %p77
      %p79 = scmp.ne.s32.totalorder %s65, %s66
      %p80 = scmp.eq.s32.totalorder %s32, 1
      %p81 = por %p79, %p80
      %p83 = scmp.ne.s32.totalorder %s66, %s82
      %p84 = scmp.eq.s32.totalorder %s32, 0
      %p85 = por %p83, %p84
      %s86 = ssub.s32 %s26, %s33
      %p87 = scmp.eq.s32.totalorder %s86, 0
      %s89 = sadd.s32 %s88, 1
      %s90 = scalar_select %p87, %s88, %s89
      %p93 = pneg %p87
      %p94 = scmp.eq.s32.totalorder %s26, 1
      %p95 = por %p93, %p94
      %p96 = scmp.ne.s32.totalorder %s88, %s91
      %p97 = scmp.eq.s32.totalorder %s26, 0
      %p98 = por %p96, %p97
      %p99 = scmp.ne.s32.totalorder %s88, %s91
      %p100 = scmp.eq.s32.totalorder %s31, 1
      %p101 = por %p99, %p100
      %p102 = scmp.ne.s32.totalorder %s91, %s92
      %p103 = scmp.eq.s32.totalorder %s31, 0
      %p104 = por %p102, %p103
      %p105 = scmp.ne.s32.totalorder %s91, %s92
      %p106 = scmp.eq.s32.totalorder %s32, 1
      %p107 = por %p105, %p106
      %p109 = scmp.ne.s32.totalorder %s92, %s108
      %p110 = scmp.eq.s32.totalorder %s32, 0
      %p111 = por %p109, %p110
      %s113 = sadd.s32 %s112, 1
      %p116 = scmp.eq.s32.totalorder %s26, 1
      %p117 = scmp.ne.s32.totalorder %s112, %s114
      %p118 = scmp.eq.s32.totalorder %s26, 0
      %p119 = por %p117, %p118
      %p120 = scmp.ne.s32.totalorder %s112, %s114
      %p121 = scmp.eq.s32.totalorder %s31, 1
      %p122 = por %p120, %p121
      %p123 = scmp.ne.s32.totalorder %s114, %s115
      %p124 = scmp.eq.s32.totalorder %s31, 0
      %p125 = por %p123, %p124
      %p126 = scmp.ne.s32.totalorder %s114, %s115
      %p127 = scmp.eq.s32.totalorder %s32, 1
      %p128 = por %p126, %p127
      %p130 = scmp.ne.s32.totalorder %s115, %s129
      %p131 = scmp.eq.s32.totalorder %s32, 0
      %p132 = por %p130, %p131
      %s134 = sadd.s32 %s133, 1
      %p137 = scmp.eq.s32.totalorder %s26, 1
      %p138 = scmp.ne.s32.totalorder %s133, %s135
      %p139 = scmp.eq.s32.totalorder %s26, 0
      %p140 = por %p138, %p139
      %p141 = scmp.ne.s32.totalorder %s133, %s135
      %p142 = scmp.eq.s32.totalorder %s31, 1
      %p143 = por %p141, %p142
      %p144 = scmp.ne.s32.totalorder %s135, %s136
      %p145 = scmp.eq.s32.totalorder %s31, 0
      %p146 = por %p144, %p145
      %p147 = scmp.ne.s32.totalorder %s135, %s136
      %p148 = scmp.eq.s32.totalorder %s32, 1
      %p149 = por %p147, %p148
      %p151 = scmp.ne.s32.totalorder %s136, %s150
      %p152 = scmp.eq.s32.totalorder %s32, 0
      %p153 = por %p151, %p152
      %s154 = ssub.s32 %s26, %s33
      %p155 = scmp.eq.s32.totalorder %s154, 0
      %s157 = sadd.s32 %s156, 1
      %s158 = scalar_select %p155, %s156, %s157
      %p161 = pneg %p155
      %p162 = scmp.eq.s32.totalorder %s26, 1
      %p163 = por %p161, %p162
      %p164 = scmp.ne.s32.totalorder %s156, %s159
      %p165 = scmp.eq.s32.totalorder %s26, 0
      %p166 = por %p164, %p165
      %p167 = scmp.ne.s32.totalorder %s156, %s159
      %p168 = scmp.eq.s32.totalorder %s31, 1
      %p169 = por %p167, %p168
      %p170 = scmp.ne.s32.totalorder %s159, %s160
      %p171 = scmp.eq.s32.totalorder %s31, 0
      %p172 = por %p170, %p171
      %p173 = scmp.ne.s32.totalorder %s159, %s160
      %p174 = scmp.eq.s32.totalorder %s32, 1
      %p175 = por %p173, %p174
      %p177 = scmp.ne.s32.totalorder %s160, %s176
      %p178 = scmp.eq.s32.totalorder %s32, 0
      %p179 = por %p177, %p178
      %s180 = ssub.s32 %s26, %s33
      %p181 = scmp.eq.s32.totalorder %s180, 0
      %s183 = sadd.s32 %s182, 1
      %s184 = scalar_select %p181, %s182, %s183
      %p187 = pneg %p181
      %p188 = scmp.eq.s32.totalorder %s26, 1
      %p189 = por %p187, %p188
      %p190 = scmp.ne.s32.totalorder %s182, %s185
      %p191 = scmp.eq.s32.totalorder %s26, 0
      %p192 = por %p190, %p191
      %p193 = scmp.ne.s32.totalorder %s182, %s185
      %p194 = scmp.eq.s32.totalorder %s31, 1
      %p195 = por %p193, %p194
      %p196 = scmp.ne.s32.totalorder %s185, %s186
      %p197 = scmp.eq.s32.totalorder %s31, 0
      %p198 = por %p196, %p197
      %p199 = scmp.ne.s32.totalorder %s185, %s186
      %p200 = scmp.eq.s32.totalorder %s32, 1
      %p201 = por %p199, %p200
      %p203 = scmp.ne.s32.totalorder %s186, %s202
      %p204 = scmp.eq.s32.totalorder %s32, 0
      %p205 = por %p203, %p204
      %p206 = scmp.le.s32.totalorder 1, %s26
      %p207 = scmp.lt.s32.totalorder %s26, 3
      %p208 = pnand %p206, %p207
      %p209 = pneg %p208
      // Predicated region
      $region9: #{tpu_custom_call.1} parent=5 // pred_check
        _
      $region10: #{tpu_custom_call.1} parent=5 // pred_check_branch
        %211 = sbr.rel (%p208) target = $region12
      $region11: #{tpu_custom_call.1} parent=5 // pred_region
        %s212 = ssub.s32 %s26, 1
        // Predicated region
        $region13: #{tpu_custom_call.1} parent=11 // pred_check
          %p213 = pneg %p125
        $region14: #{tpu_custom_call.1} parent=11 // pred_check_branch
          %215 = sbr.rel (%p213) target = $region16
        $region15: #{tpu_custom_call.1} parent=11 // pred_region
          %s217 = ssub.s32 2048, 2048
          %218 = vsyncadd [#allocation9], %s217
          %s219 = sshll.u32 [#allocation8], 4
          %s220 = int_to_ptr.vmem [resolvable:$true] %s219
          %225 = dma.hbm_to_vmem [thread:$0]  %s3, 2048, %s220, [#allocation9], 128, 128, 8
        $region16: #{tpu_custom_call.1} parent=11 // pred_fallthru
          _
        // Predicated region
        $region17: #{tpu_custom_call.1} parent=11 // pred_check
          %p226 = pneg %p146
        $region18: #{tpu_custom_call.1} parent=11 // pred_check_branch
          %228 = sbr.rel (%p226) target = $region20
        $region19: #{tpu_custom_call.1} parent=11 // pred_region
          _
        $region20: #{tpu_custom_call.1} parent=11 // pred_fallthru
          _
      $region12: #{tpu_custom_call.1} parent=5 // pred_fallthru
        _
      %p229 = scmp.lt.s32.totalorder %s26, 2
      // Predicated region
      $region21: #{tpu_custom_call.1} parent=5 // pred_check
        %p230 = pneg %p229
      $region22: #{tpu_custom_call.1} parent=5 // pred_check_branch
        %232 = sbr.rel (%p230) target = $region24
      $region23: #{tpu_custom_call.1} parent=5 // pred_region
        // Predicated region
        $region25: #{tpu_custom_call.1} parent=23 // pred_check
          %p233 = pneg %p46
        $region26: #{tpu_custom_call.1} parent=23 // pred_check_branch
          %235 = sbr.rel (%p233) target = $region28
        $region27: #{tpu_custom_call.1} parent=23 // pred_region
          %s236 = sand.u32 %s36, 1
          %s237 = scalar_lea.sflag [#allocation3], %s236
          %s238 = sand.u32 %s36, 1
          %s239 = smul.addr %s238, 128
          %s240 = scalar_lea.vmem [#allocation2], %s239
          %s242 = ssub.s32 2048, 2048
          %243 = vsyncadd %s237, %s242
          %s244 = smul.addr %s26, 16
          %s245 = smul.addr %s244, 128
          %s246 = scalar_lea.hbm %s0, %s245
          %s247 = sshll.u32 %s240, 4
          %s248 = int_to_ptr.vmem [resolvable:$true] %s247
          %253 = dma.hbm_to_vmem [thread:$0]  %s246, 2048, %s248, %s237, 128, 128, 8
        $region28: #{tpu_custom_call.1} parent=23 // pred_fallthru
          _
        // Predicated region
        $region29: #{tpu_custom_call.1} parent=23 // pred_check
          %p254 = pneg %p72
        $region30: #{tpu_custom_call.1} parent=23 // pred_check_branch
          %256 = sbr.rel (%p254) target = $region32
        $region31: #{tpu_custom_call.1} parent=23 // pred_region
          %s257 = sand.u32 %s26, 1
          %s258 = scalar_lea.sflag [#allocation6], %s257
          %s259 = sand.u32 %s62, 1
          %s260 = smul.addr %s259, 128
          %s261 = scalar_lea.vmem [#allocation5], %s260
          %s263 = ssub.s32 2048, 2048
          %264 = vsyncadd %s258, %s263
          %s265 = smul.addr %s26, 16
          %s266 = smul.addr %s265, 128
          %s267 = scalar_lea.hbm %s1, %s266
          %s268 = sshll.u32 %s261, 4
          %s269 = int_to_ptr.vmem [resolvable:$true] %s268
          %274 = dma.hbm_to_vmem [thread:$0]  %s267, 2048, %s269, %s258, 128, 128, 8
        $region32: #{tpu_custom_call.1} parent=23 // pred_fallthru
          _
        // Predicated region
        $region33: #{tpu_custom_call.1} parent=23 // pred_check
          %p275 = pneg %p98
        $region34: #{tpu_custom_call.1} parent=23 // pred_check_branch
          %277 = sbr.rel (%p275) target = $region36
        $region35: #{tpu_custom_call.1} parent=23 // pred_region
          %s278 = sand.u32 %s26, 1
          %s279 = scalar_lea.sflag [#allocation6], %s278
          %s280 = sand.u32 %s88, 1
          %s281 = smul.addr %s280, 128
          %s282 = scalar_lea.vmem [#allocation7], %s281
          %s284 = ssub.s32 2048, 2048
          %285 = vsyncadd %s279, %s284
          %s286 = smul.addr %s26, 16
          %s287 = smul.addr %s286, 128
          %s288 = scalar_lea.hbm %s2, %s287
          %s289 = sshll.u32 %s282, 4
          %s290 = int_to_ptr.vmem [resolvable:$true] %s289
          %295 = dma.hbm_to_vmem [thread:$0]  %s288, 2048, %s290, %s279, 128, 128, 8
        $region36: #{tpu_custom_call.1} parent=23 // pred_fallthru
          _
      $region24: #{tpu_custom_call.1} parent=5 // pred_fallthru
        _
      %p296 = scmp.le.s32.totalorder 1, %s26
      %p297 = scmp.lt.s32.totalorder %s26, 3
      %p298 = pnand %p296, %p297
      %p299 = pneg %p298
      // Predicated region
      $region37: #{tpu_custom_call.1} parent=5 // pred_check
        _
      $region38: #{tpu_custom_call.1} parent=5 // pred_check_branch
        %301 = sbr.rel (%p298) target = $region40
      $region39: #{tpu_custom_call.1} parent=5 // pred_region
        %s302 = ssub.s32 %s26, 1
        %s303 = sand.u32 %s39, 1
        %s304 = scalar_lea.sflag [#allocation3], %s303
        %s305 = sand.u32 %s39, 1
        %s306 = smul.addr %s305, 128
        %s307 = scalar_lea.vmem [#allocation2], %s306
        // Predicated region
        $region41: #{tpu_custom_call.1} parent=39 // pred_check
          %p308 = pneg %p52
        $region42: #{tpu_custom_call.1} parent=39 // pred_check_branch
          %310 = sbr.rel (%p308) target = $region44
        $region43: #{tpu_custom_call.1} parent=39 // pred_region
          %311 = dma.done %s304, 2048
        $region44: #{tpu_custom_call.1} parent=39 // pred_fallthru
          _
        %s312 = sand.u32 %s31, 1
        %s313 = scalar_lea.sflag [#allocation6], %s312
        %s314 = sand.u32 %s65, 1
        %s315 = smul.addr %s314, 128
        %s316 = scalar_lea.vmem [#allocation5], %s315
        // Predicated region
        $region45: #{tpu_custom_call.1} parent=39 // pred_check
          %p317 = pneg %p78
        $region46: #{tpu_custom_call.1} parent=39 // pred_check_branch
          %319 = sbr.rel (%p317) target = $region48
        $region47: #{tpu_custom_call.1} parent=39 // pred_region
          %320 = dma.done %s313, 2048
        $region48: #{tpu_custom_call.1} parent=39 // pred_fallthru
          _
        %s321 = sand.u32 %s31, 1
        %s322 = scalar_lea.sflag [#allocation6], %s321
        %s323 = sand.u32 %s91, 1
        %s324 = smul.addr %s323, 128
        %s325 = scalar_lea.vmem [#allocation7], %s324
        // Predicated region
        $region49: #{tpu_custom_call.1} parent=39 // pred_check
          %p326 = pneg %p104
        $region50: #{tpu_custom_call.1} parent=39 // pred_check_branch
          %328 = sbr.rel (%p326) target = $region52
        $region51: #{tpu_custom_call.1} parent=39 // pred_region
          %329 = dma.done %s322, 2048
        $region52: #{tpu_custom_call.1} parent=39 // pred_fallthru
          _
        // Predicated region
        $region53: #{tpu_custom_call.1} parent=39 // pred_check
          %p330 = pneg %p125
        $region54: #{tpu_custom_call.1} parent=39 // pred_check_branch
          %332 = sbr.rel (%p330) target = $region56
        $region55: #{tpu_custom_call.1} parent=39 // pred_region
          %333 = dma.done [#allocation9], 2048
        $region56: #{tpu_custom_call.1} parent=39 // pred_fallthru
          _
        %s334 = sand.u32 %s39, 1
        %s335 = scalar_lea.sflag [#allocation3], %s334
        %s336 = sand.u32 %s39, 1
        %s337 = smul.addr %s336, 128
        %s338 = scalar_lea.vmem [#allocation2], %s337
        %p339 = pneg %p52
        %p340 = pneg %p49
        %s341 = sand.u32 %s31, 1
        %s342 = scalar_lea.sflag [#allocation6], %s341
        %s343 = sand.u32 %s65, 1
        %s344 = smul.addr %s343, 128
        %s345 = scalar_lea.vmem [#allocation5], %s344
        %p346 = pneg %p78
        %p347 = pneg %p75
        %s348 = sand.u32 %s31, 1
        %s349 = scalar_lea.sflag [#allocation6], %s348
        %s350 = sand.u32 %s91, 1
        %s351 = smul.addr %s350, 128
        %s352 = scalar_lea.vmem [#allocation7], %s351
        %p353 = pneg %p104
        %p354 = pneg %p101
        %p355 = pneg %p125
        %p356 = pneg %p122
        %p357 = pneg %p146
        %p358 = pneg %p143
        %p359 = pneg %p172
        %p360 = pneg %p169
        %s361 = sand.u32 %s159, 1
        %s362 = scalar_lea.sflag [#allocation4], %s361
        %s363 = sand.u32 %s159, 1
        %s364 = smul.addr %s363, 128
        %s365 = scalar_lea.vmem [#allocation10], %s364
        %p366 = pneg %p198
        %p367 = pneg %p195
        %s368 = sand.u32 %s185, 1
        %s369 = scalar_lea.sflag [#allocation12], %s368
        %s370 = sand.u32 %s185, 1
        %s371 = smul.addr %s370, 128
        %s372 = scalar_lea.vmem [#allocation11], %s371
        %v373 = vld [vmem:[%s307] sm:$0xff]
        %v374 = vld [vmem:[%s307 + $0x8] sm:$0xff]
        %v375 = vld [vmem:[%s307 + $0x10] sm:$0xff]
        %v376 = vld [vmem:[%s307 + $0x18] sm:$0xff]
        %v377 = vld [vmem:[%s307 + $0x20] sm:$0xff]
        %v378 = vld [vmem:[%s307 + $0x28] sm:$0xff]
        %v379 = vld [vmem:[%s307 + $0x30] sm:$0xff]
        %v380 = vld [vmem:[%s307 + $0x38] sm:$0xff]
        %v381 = vld [vmem:[%s307 + $0x40] sm:$0xff]
        %v382 = vld [vmem:[%s307 + $0x48] sm:$0xff]
        %v383 = vld [vmem:[%s307 + $0x50] sm:$0xff]
        %v384 = vld [vmem:[%s307 + $0x58] sm:$0xff]
        %v385 = vld [vmem:[%s307 + $0x60] sm:$0xff]
        %v386 = vld [vmem:[%s307 + $0x68] sm:$0xff]
        %v387 = vld [vmem:[%s307 + $0x70] sm:$0xff]
        %v388 = vld [vmem:[%s307 + $0x78] sm:$0xff]
        %v389 = vld [vmem:[%s316] sm:$0xff]
        %v390 = vld [vmem:[%s316 + $0x8] sm:$0xff]
        %v391 = vld [vmem:[%s316 + $0x10] sm:$0xff]
        %v392 = vld [vmem:[%s316 + $0x18] sm:$0xff]
        %v393 = vld [vmem:[%s316 + $0x20] sm:$0xff]
        %v394 = vld [vmem:[%s316 + $0x28] sm:$0xff]
        %v395 = vld [vmem:[%s316 + $0x30] sm:$0xff]
        %v396 = vld [vmem:[%s316 + $0x38] sm:$0xff]
        %v397 = vld [vmem:[%s316 + $0x40] sm:$0xff]
        %v398 = vld [vmem:[%s316 + $0x48] sm:$0xff]
        %v399 = vld [vmem:[%s316 + $0x50] sm:$0xff]
        %v400 = vld [vmem:[%s316 + $0x58] sm:$0xff]
        %v401 = vld [vmem:[%s316 + $0x60] sm:$0xff]
        %v402 = vld [vmem:[%s316 + $0x68] sm:$0xff]
        %v403 = vld [vmem:[%s316 + $0x70] sm:$0xff]
        %v404 = vld [vmem:[%s316 + $0x78] sm:$0xff]
        %v405 = vld [vmem:[%s325] sm:$0xff]
        %v406 = vld [vmem:[%s325 + $0x8] sm:$0xff]
        %v407 = vld [vmem:[%s325 + $0x10] sm:$0xff]
        %v408 = vld [vmem:[%s325 + $0x18] sm:$0xff]
        %v409 = vld [vmem:[%s325 + $0x20] sm:$0xff]
        %v410 = vld [vmem:[%s325 + $0x28] sm:$0xff]
        %v411 = vld [vmem:[%s325 + $0x30] sm:$0xff]
        %v412 = vld [vmem:[%s325 + $0x38] sm:$0xff]
        %v413 = vld [vmem:[%s325 + $0x40] sm:$0xff]
        %v414 = vld [vmem:[%s325 + $0x48] sm:$0xff]
        %v415 = vld [vmem:[%s325 + $0x50] sm:$0xff]
        %v416 = vld [vmem:[%s325 + $0x58] sm:$0xff]
        %v417 = vld [vmem:[%s325 + $0x60] sm:$0xff]
        %v418 = vld [vmem:[%s325 + $0x68] sm:$0xff]
        %v419 = vld [vmem:[%s325 + $0x70] sm:$0xff]
        %v420 = vld [vmem:[%s325 + $0x78] sm:$0xff]
        %421 = vmatprep.subr.mxu0 0.0
        %422 = vmatpush1.xpose.msra.mxu0 %v389
        %423 = vmatprep.subr.mxu0 0.0
        %424 = vmatpush1.xpose.msra.mxu0 %v390
        %425 = vmatprep.subr.mxu0 0.0
        %426 = vmatpush1.xpose.msra.mxu0 %v391
        %427 = vmatprep.subr.mxu0 0.0
        %428 = vmatpush1.xpose.msra.mxu0 %v392
        %429 = vmatprep.subr.mxu0 0.0
        %430 = vmatpush1.xpose.msra.mxu0 %v393
        %431 = vmatprep.subr.mxu0 0.0
        %432 = vmatpush1.xpose.msra.mxu0 %v394
        %433 = vmatprep.subr.mxu0 0.0
        %434 = vmatpush1.xpose.msra.mxu0 %v395
        %435 = vmatprep.subr.mxu0 0.0
        %436 = vmatpush1.xpose.msra.mxu0 %v396
        %437 = vmatprep.subr.mxu0 0.0
        %438 = vmatpush1.xpose.msra.mxu0 %v397
        %439 = vmatprep.subr.mxu0 0.0
        %440 = vmatpush1.xpose.msra.mxu0 %v398
        %441 = vmatprep.subr.mxu0 0.0
        %442 = vmatpush1.xpose.msra.mxu0 %v399
        %443 = vmatprep.subr.mxu0 0.0
        %444 = vmatpush1.xpose.msra.mxu0 %v400
        %445 = vmatprep.subr.mxu0 0.0
        %446 = vmatpush1.xpose.msra.mxu0 %v401
        %447 = vmatprep.subr.mxu0 0.0
        %448 = vmatpush1.xpose.msra.mxu0 %v402
        %449 = vmatprep.subr.mxu0 0.0
        %450 = vmatpush1.xpose.msra.mxu0 %v403
        %451 = vmatprep.subr.mxu0 0.0
        %452 = vmatpush1.xpose.msra.mxu0 %v404
        %453 = vmatprep.subr.mxu0 0.0
        %454 = vmatpush1.xpose.msra.mxu0 0.0
        %455 = vmatprep.subr.mxu0 0.0
        %456 = vmatpush1.xpose.msra.mxu0 0.0
        %457 = vmatprep.subr.mxu0 0.0
        %458 = vmatpush1.xpose.msra.mxu0 0.0
        %459 = vmatprep.subr.mxu0 0.0
        %460 = vmatpush1.xpose.msra.mxu0 0.0
        %461 = vmatprep.subr.mxu0 0.0
        %462 = vmatpush1.xpose.msra.mxu0 0.0
        %463 = vmatprep.subr.mxu0 0.0
        %464 = vmatpush1.xpose.msra.mxu0 0.0
        %465 = vmatprep.subr.mxu0 0.0
        %466 = vmatpush1.xpose.msra.mxu0 0.0
        %467 = vmatprep.subr.mxu0 0.0
        %468 = vmatpush1.xpose.msra.mxu0 0.0
        %469 = vmatprep.subr.mxu0 0.0
        %470 = vmatpush1.xpose.msra.mxu0 0.0
        %471 = vmatprep.subr.mxu0 0.0
        %472 = vmatpush1.xpose.msra.mxu0 0.0
        %473 = vmatprep.subr.mxu0 0.0
        %474 = vmatpush1.xpose.msra.mxu0 0.0
        %475 = vmatprep.subr.mxu0 0.0
        %476 = vmatpush1.xpose.msra.mxu0 0.0
        %477 = vmatprep.subr.mxu0 0.0
        %478 = vmatpush1.xpose.msra.mxu0 0.0
        %479 = vmatprep.subr.mxu0 0.0
        %480 = vmatpush1.xpose.msra.mxu0 0.0
        %481 = vmatprep.subr.mxu0 0.0
        %482 = vmatpush1.xpose.msra.mxu0 0.0
        %483 = vmatprep.subr.mxu0 0.0
        %484 = vmatpush1.xpose.msra.mxu0 0.0
        %485 = vmatprep.mubr.f32.mxu0 0.0
        %486 = vmatmul.mubr.f32.gmra.mrb[0].mxu0 %v373
        %v487 = vpop.f32.mrb[0].mxu0
        %v488 = vadd.f32 0.0, %v487
        %v489 = vpop.f32.mrb[0].mxu0
        %490 = vmatprep.mubr.f32.mxu0 0.0
        %491 = vmatmul.mubr.f32.gmra.mrb[0].mxu0 %v374
        %v492 = vpop.f32.mrb[0].mxu0
        %v493 = vadd.f32 0.0, %v492
        %v494 = vpop.f32.mrb[0].mxu0
        %495 = vmatprep.mubr.f32.mxu0 0.0
        %496 = vmatmul.mubr.f32.gmra.mrb[0].mxu0 %v375
        %v497 = vpop.f32.mrb[0].mxu0
        %v498 = vadd.f32 0.0, %v497
        %v499 = vpop.f32.mrb[0].mxu0
        %500 = vmatprep.mubr.f32.mxu0 0.0
        %501 = vmatmul.mubr.f32.gmra.mrb[0].mxu0 %v376
        %v502 = vpop.f32.mrb[0].mxu0
        %v503 = vadd.f32 0.0, %v502
        %v504 = vpop.f32.mrb[0].mxu0
        %505 = vmatprep.mubr.f32.mxu0 0.0
        %506 = vmatmul.mubr.f32.gmra.mrb[0].mxu0 %v377
        %v507 = vpop.f32.mrb[0].mxu0
        %v508 = vadd.f32 0.0, %v507
        %v509 = vpop.f32.mrb[0].mxu0
        %510 = vmatprep.mubr.f32.mxu0 0.0
        %511 = vmatmul.mubr.f32.gmra.mrb[0].mxu0 %v378
        %v512 = vpop.f32.mrb[0].mxu0
        %v513 = vadd.f32 0.0, %v512
        %v514 = vpop.f32.mrb[0].mxu0
        %515 = vmatprep.mubr.f32.mxu0 0.0
        %516 = vmatmul.mubr.f32.gmra.mrb[0].mxu0 %v379
        %v517 = vpop.f32.mrb[0].mxu0
        %v518 = vadd.f32 0.0, %v517
        %v519 = vpop.f32.mrb[0].mxu0
        %520 = vmatprep.mubr.f32.mxu0 0.0
        %521 = vmatmul.mubr.f32.gmra.mrb[0].mxu0 %v380
        %v522 = vpop.f32.mrb[0].mxu0
        %v523 = vadd.f32 0.0, %v522
        %v524 = vpop.f32.mrb[0].mxu0
        %525 = vmatprep.mubr.f32.mxu0 0.0
        %526 = vmatmul.mubr.f32.gmra.mrb[0].mxu0 %v381
        %v527 = vpop.f32.mrb[0].mxu0
        %v528 = vadd.f32 0.0, %v527
        %v529 = vpop.f32.mrb[0].mxu0
        %530 = vmatprep.mubr.f32.mxu0 0.0
        %531 = vmatmul.mubr.f32.gmra.mrb[0].mxu0 %v382
        %v532 = vpop.f32.mrb[0].mxu0
        %v533 = vadd.f32 0.0, %v532
        %v534 = vpop.f32.mrb[0].mxu0
        %535 = vmatprep.mubr.f32.mxu0 0.0
        %536 = vmatmul.mubr.f32.gmra.mrb[0].mxu0 %v383
        %v537 = vpop.f32.mrb[0].mxu0
        %v538 = vadd.f32 0.0, %v537
        %v539 = vpop.f32.mrb[0].mxu0
        %540 = vmatprep.mubr.f32.mxu0 0.0
        %541 = vmatmul.mubr.f32.gmra.mrb[0].mxu0 %v384
        %v542 = vpop.f32.mrb[0].mxu0
        %v543 = vadd.f32 0.0, %v542
        %v544 = vpop.f32.mrb[0].mxu0
        %545 = vmatprep.mubr.f32.mxu0 0.0
        %546 = vmatmul.mubr.f32.gmra.mrb[0].mxu0 %v385
        %v547 = vpop.f32.mrb[0].mxu0
        %v548 = vadd.f32 0.0, %v547
        %v549 = vpop.f32.mrb[0].mxu0
        %550 = vmatprep.mubr.f32.mxu0 0.0
        %551 = vmatmul.mubr.f32.gmra.mrb[0].mxu0 %v386
        %v552 = vpop.f32.mrb[0].mxu0
        %v553 = vadd.f32 0.0, %v552
        %v554 = vpop.f32.mrb[0].mxu0
        %555 = vmatprep.mubr.f32.mxu0 0.0
        %556 = vmatmul.mubr.f32.gmra.mrb[0].mxu0 %v387
        %v557 = vpop.f32.mrb[0].mxu0
        %v558 = vadd.f32 0.0, %v557
        %v559 = vpop.f32.mrb[0].mxu0
        %560 = vmatprep.mubr.f32.mxu0 0.0
        %561 = vmatmul.mubr.f32.gmra.mrb[0].mxu0 %v388
        %v562 = vpop.f32.mrb[0].mxu0
        %v563 = vadd.f32 0.0, %v562
        %v564 = vpop.f32.mrb[0].mxu0
        %565 = vdwg.mxu0
        %v566 = vmul.f32 %v488, 0.17677669
        %v567 = vmul.f32 %v493, 0.17677669
        %v568 = vmul.f32 %v498, 0.17677669
        %v569 = vmul.f32 %v503, 0.17677669
        %v570 = vmul.f32 %v508, 0.17677669
        %v571 = vmul.f32 %v513, 0.17677669
        %v572 = vmul.f32 %v518, 0.17677669
        %v573 = vmul.f32 %v523, 0.17677669
        %v574 = vmul.f32 %v528, 0.17677669
        %v575 = vmul.f32 %v533, 0.17677669
        %v576 = vmul.f32 %v538, 0.17677669
        %v577 = vmul.f32 %v543, 0.17677669
        %v578 = vmul.f32 %v548, 0.17677669
        %v579 = vmul.f32 %v553, 0.17677669
        %v580 = vmul.f32 %v558, 0.17677669
        %v581 = vmul.f32 %v563, 0.17677669
        %v582 = vlaneseq
        %v583 = vand.u32 %v582, 127
        %vm584 = vcmp.lt.s32.totalorder %v583, 9
        %v585 = vsel %vm584, %v566, -inf
        %v586 = vsel %vm584, %v567, -inf
        %v587 = vsel %vm584, %v568, -inf
        %v588 = vsel %vm584, %v569, -inf
        %v589 = vsel %vm584, %v570, -inf
        %v590 = vsel %vm584, %v571, -inf
        %v591 = vsel %vm584, %v572, -inf
        %v592 = vsel %vm584, %v573, -inf
        %v593 = vsel %vm584, %v574, -inf
        %v594 = vsel %vm584, %v575, -inf
        %v595 = vsel %vm584, %v576, -inf
        %v596 = vsel %vm584, %v577, -inf
        %v597 = vsel %vm584, %v578, -inf
        %v598 = vsel %vm584, %v579, -inf
        %v599 = vsel %vm584, %v580, -inf
        %v600 = vsel %vm584, %v581, -inf
        %601 = vmax.xlane.f32.xlu0 %v585
        %v602 = vpop.xlane.xlu0 %601
        %603 = vmax.xlane.f32.xlu0 %v586
        %v604 = vpop.xlane.xlu0 %603
        %605 = vmax.xlane.f32.xlu0 %v587
        %v606 = vpop.xlane.xlu0 %605
        %607 = vmax.xlane.f32.xlu0 %v588
        %v608 = vpop.xlane.xlu0 %607
        %609 = vmax.xlane.f32.xlu0 %v589
        %v610 = vpop.xlane.xlu0 %609
        %611 = vmax.xlane.f32.xlu0 %v590
        %v612 = vpop.xlane.xlu0 %611
        %613 = vmax.xlane.f32.xlu0 %v591
        %v614 = vpop.xlane.xlu0 %613
        %615 = vmax.xlane.f32.xlu0 %v592
        %v616 = vpop.xlane.xlu0 %615
        %617 = vmax.xlane.f32.xlu0 %v593
        %v618 = vpop.xlane.xlu0 %617
        %619 = vmax.xlane.f32.xlu0 %v594
        %v620 = vpop.xlane.xlu0 %619
        %621 = vmax.xlane.f32.xlu0 %v595
        %v622 = vpop.xlane.xlu0 %621
        %623 = vmax.xlane.f32.xlu0 %v596
        %v624 = vpop.xlane.xlu0 %623
        %625 = vmax.xlane.f32.xlu0 %v597
        %v626 = vpop.xlane.xlu0 %625
        %627 = vmax.xlane.f32.xlu0 %v598
        %v628 = vpop.xlane.xlu0 %627
        %629 = vmax.xlane.f32.xlu0 %v599
        %v630 = vpop.xlane.xlu0 %629
        %631 = vmax.xlane.f32.xlu0 %v600
        %v632 = vpop.xlane.xlu0 %631
        %v633 = vsub.f32 %v585, %v602
        %v634 = vsub.f32 %v586, %v604
        %v635 = vsub.f32 %v587, %v606
        %v636 = vsub.f32 %v588, %v608
        %v637 = vsub.f32 %v589, %v610
        %v638 = vsub.f32 %v590, %v612
        %v639 = vsub.f32 %v591, %v614
        %v640 = vsub.f32 %v592, %v616
        %v641 = vsub.f32 %v593, %v618
        %v642 = vsub.f32 %v594, %v620
        %v643 = vsub.f32 %v595, %v622
        %v644 = vsub.f32 %v596, %v624
        %v645 = vsub.f32 %v597, %v626
        %v646 = vsub.f32 %v598, %v628
        %v647 = vsub.f32 %v599, %v630
        %v648 = vsub.f32 %v600, %v632
        %v649 = vmul.f32 %v633, 1.442695
        %v650 = vpow.pop %v649
        %v651 = vmul.f32 %v634, 1.442695
        %v652 = vpow.pop %v651
        %v653 = vmul.f32 %v635, 1.442695
        %v654 = vpow.pop %v653
        %v655 = vmul.f32 %v636, 1.442695
        %v656 = vpow.pop %v655
        %v657 = vmul.f32 %v637, 1.442695
        %v658 = vpow.pop %v657
        %v659 = vmul.f32 %v638, 1.442695
        %v660 = vpow.pop %v659
        %v661 = vmul.f32 %v639, 1.442695
        %v662 = vpow.pop %v661
        %v663 = vmul.f32 %v640, 1.442695
        %v664 = vpow.pop %v663
        %v665 = vmul.f32 %v641, 1.442695
        %v666 = vpow.pop %v665
        %v667 = vmul.f32 %v642, 1.442695
        %v668 = vpow.pop %v667
        %v669 = vmul.f32 %v643, 1.442695
        %v670 = vpow.pop %v669
        %v671 = vmul.f32 %v644, 1.442695
        %v672 = vpow.pop %v671
        %v673 = vmul.f32 %v645, 1.442695
        %v674 = vpow.pop %v673
        %v675 = vmul.f32 %v646, 1.442695
        %v676 = vpow.pop %v675
        %v677 = vmul.f32 %v647, 1.442695
        %v678 = vpow.pop %v677
        %v679 = vmul.f32 %v648, 1.442695
        %v680 = vpow.pop %v679
        %681 = vadd.xlane.f32.xlu0 %v650
        %v682 = vpop.xlane.xlu0 %681
        %683 = vadd.xlane.f32.xlu0 %v652
        %v684 = vpop.xlane.xlu0 %683
        %685 = vadd.xlane.f32.xlu0 %v654
        %v686 = vpop.xlane.xlu0 %685
        %687 = vadd.xlane.f32.xlu0 %v656
        %v688 = vpop.xlane.xlu0 %687
        %689 = vadd.xlane.f32.xlu0 %v658
        %v690 = vpop.xlane.xlu0 %689
        %691 = vadd.xlane.f32.xlu0 %v660
        %v692 = vpop.xlane.xlu0 %691
        %693 = vadd.xlane.f32.xlu0 %v662
        %v694 = vpop.xlane.xlu0 %693
        %695 = vadd.xlane.f32.xlu0 %v664
        %v696 = vpop.xlane.xlu0 %695
        %697 = vadd.xlane.f32.xlu0 %v666
        %v698 = vpop.xlane.xlu0 %697
        %699 = vadd.xlane.f32.xlu0 %v668
        %v700 = vpop.xlane.xlu0 %699
        %701 = vadd.xlane.f32.xlu0 %v670
        %v702 = vpop.xlane.xlu0 %701
        %703 = vadd.xlane.f32.xlu0 %v672
        %v704 = vpop.xlane.xlu0 %703
        %705 = vadd.xlane.f32.xlu0 %v674
        %v706 = vpop.xlane.xlu0 %705
        %707 = vadd.xlane.f32.xlu0 %v676
        %v708 = vpop.xlane.xlu0 %707
        %709 = vadd.xlane.f32.xlu0 %v678
        %v710 = vpop.xlane.xlu0 %709
        %711 = vadd.xlane.f32.xlu0 %v680
        %v712 = vpop.xlane.xlu0 %711
        %v713 = vrcp.pop %v682
        %v714 = vrcp.pop %v684
        %v715 = vrcp.pop %v686
        %v716 = vrcp.pop %v688
        %v717 = vrcp.pop %v690
        %v718 = vrcp.pop %v692
        %v719 = vrcp.pop %v694
        %v720 = vrcp.pop %v696
        %v721 = vrcp.pop %v698
        %v722 = vrcp.pop %v700
        %v723 = vrcp.pop %v702
        %v724 = vrcp.pop %v704
        %v725 = vrcp.pop %v706
        %v726 = vrcp.pop %v708
        %v727 = vrcp.pop %v710
        %v728 = vrcp.pop %v712
        %v729 = vmul.f32 %v682, %v713
        %v730 = vmul.f32 %v684, %v714
        %v731 = vmul.f32 %v686, %v715
        %v732 = vmul.f32 %v688, %v716
        %v733 = vmul.f32 %v690, %v717
        %v734 = vmul.f32 %v692, %v718
        %v735 = vmul.f32 %v694, %v719
        %v736 = vmul.f32 %v696, %v720
        %v737 = vmul.f32 %v698, %v721
        %v738 = vmul.f32 %v700, %v722
        %v739 = vmul.f32 %v702, %v723
        %v740 = vmul.f32 %v704, %v724
        %v741 = vmul.f32 %v706, %v725
        %v742 = vmul.f32 %v708, %v726
        %v743 = vmul.f32 %v710, %v727
        %v744 = vmul.f32 %v712, %v728
        %v745 = vsub.f32 2.0, %v729
        %v746 = vsub.f32 2.0, %v730
        %v747 = vsub.f32 2.0, %v731
        %v748 = vsub.f32 2.0, %v732
        %v749 = vsub.f32 2.0, %v733
        %v750 = vsub.f32 2.0, %v734
        %v751 = vsub.f32 2.0, %v735
        %v752 = vsub.f32 2.0, %v736
        %v753 = vsub.f32 2.0, %v737
        %v754 = vsub.f32 2.0, %v738
        %v755 = vsub.f32 2.0, %v739
        %v756 = vsub.f32 2.0, %v740
        %v757 = vsub.f32 2.0, %v741
        %v758 = vsub.f32 2.0, %v742
        %v759 = vsub.f32 2.0, %v743
        %v760 = vsub.f32 2.0, %v744
        %v761 = vmul.f32 %v713, %v745
        %v762 = vmul.f32 %v714, %v746
        %v763 = vmul.f32 %v715, %v747
        %v764 = vmul.f32 %v716, %v748
        %v765 = vmul.f32 %v717, %v749
        %v766 = vmul.f32 %v718, %v750
        %v767 = vmul.f32 %v719, %v751
        %v768 = vmul.f32 %v720, %v752
        %v769 = vmul.f32 %v721, %v753
        %v770 = vmul.f32 %v722, %v754
        %v771 = vmul.f32 %v723, %v755
        %v772 = vmul.f32 %v724, %v756
        %v773 = vmul.f32 %v725, %v757
        %v774 = vmul.f32 %v726, %v758
        %v775 = vmul.f32 %v727, %v759
        %v776 = vmul.f32 %v728, %v760
        %v777 = vmul.f32 %v650, %v761
        %v778 = vmul.f32 %v652, %v762
        %v779 = vmul.f32 %v654, %v763
        %v780 = vmul.f32 %v656, %v764
        %v781 = vmul.f32 %v658, %v765
        %v782 = vmul.f32 %v660, %v766
        %v783 = vmul.f32 %v662, %v767
        %v784 = vmul.f32 %v664, %v768
        %v785 = vmul.f32 %v666, %v769
        %v786 = vmul.f32 %v668, %v770
        %v787 = vmul.f32 %v670, %v771
        %v788 = vmul.f32 %v672, %v772
        %v789 = vmul.f32 %v674, %v773
        %v790 = vmul.f32 %v676, %v774
        %v791 = vmul.f32 %v678, %v775
        %v792 = vmul.f32 %v680, %v776
        %793 = vst [vmem:[%s372] sm:$0xff] %v777
        %794 = vst [vmem:[%s372 + $0x8] sm:$0xff] %v778
        %795 = vst [vmem:[%s372 + $0x10] sm:$0xff] %v779
        %796 = vst [vmem:[%s372 + $0x18] sm:$0xff] %v780
        %797 = vst [vmem:[%s372 + $0x20] sm:$0xff] %v781
        %798 = vst [vmem:[%s372 + $0x28] sm:$0xff] %v782
        %799 = vst [vmem:[%s372 + $0x30] sm:$0xff] %v783
        %800 = vst [vmem:[%s372 + $0x38] sm:$0xff] %v784
        %801 = vst [vmem:[%s372 + $0x40] sm:$0xff] %v785
        %802 = vst [vmem:[%s372 + $0x48] sm:$0xff] %v786
        %803 = vst [vmem:[%s372 + $0x50] sm:$0xff] %v787
        %804 = vst [vmem:[%s372 + $0x58] sm:$0xff] %v788
        %805 = vst [vmem:[%s372 + $0x60] sm:$0xff] %v789
        %806 = vst [vmem:[%s372 + $0x68] sm:$0xff] %v790
        %807 = vst [vmem:[%s372 + $0x70] sm:$0xff] %v791
        %808 = vst [vmem:[%s372 + $0x78] sm:$0xff] %v792
        %v809 = vld [vmem:[#allocation8] sm:$0xff]
        %v810 = vld [vmem:[#allocation8 + $0x8] sm:$0xff]
        %v811 = vld [vmem:[#allocation8 + $0x10] sm:$0xff]
        %v812 = vld [vmem:[#allocation8 + $0x18] sm:$0xff]
        %v813 = vld [vmem:[#allocation8 + $0x20] sm:$0xff]
        %v814 = vld [vmem:[#allocation8 + $0x28] sm:$0xff]
        %v815 = vld [vmem:[#allocation8 + $0x30] sm:$0xff]
        %v816 = vld [vmem:[#allocation8 + $0x38] sm:$0xff]
        %v817 = vld [vmem:[#allocation8 + $0x40] sm:$0xff]
        %v818 = vld [vmem:[#allocation8 + $0x48] sm:$0xff]
        %v819 = vld [vmem:[#allocation8 + $0x50] sm:$0xff]
        %v820 = vld [vmem:[#allocation8 + $0x58] sm:$0xff]
        %v821 = vld [vmem:[#allocation8 + $0x60] sm:$0xff]
        %v822 = vld [vmem:[#allocation8 + $0x68] sm:$0xff]
        %v823 = vld [vmem:[#allocation8 + $0x70] sm:$0xff]
        %v824 = vld [vmem:[#allocation8 + $0x78] sm:$0xff]
        %v825 = vld [vmem:[%s4] sm:$0xff]
        %vm826 = vcmp.eq.s32.totalorder %v809, 0
        %vm827 = vcmp.eq.s32.totalorder %v810, 0
        %vm828 = vcmp.eq.s32.totalorder %v811, 0
        %vm829 = vcmp.eq.s32.totalorder %v812, 0
        %vm830 = vcmp.eq.s32.totalorder %v813, 0
        %vm831 = vcmp.eq.s32.totalorder %v814, 0
        %vm832 = vcmp.eq.s32.totalorder %v815, 0
        %vm833 = vcmp.eq.s32.totalorder %v816, 0
        %vm834 = vcmp.eq.s32.totalorder %v817, 0
        %vm835 = vcmp.eq.s32.totalorder %v818, 0
        %vm836 = vcmp.eq.s32.totalorder %v819, 0
        %vm837 = vcmp.eq.s32.totalorder %v820, 0
        %vm838 = vcmp.eq.s32.totalorder %v821, 0
        %vm839 = vcmp.eq.s32.totalorder %v822, 0
        %vm840 = vcmp.eq.s32.totalorder %v823, 0
        %vm841 = vcmp.eq.s32.totalorder %v824, 0
        %v842 = vsel %vm826, 1, 0
        %v843 = vsel %vm827, 1, 0
        %v844 = vsel %vm828, 1, 0
        %v845 = vsel %vm829, 1, 0
        %v846 = vsel %vm830, 1, 0
        %v847 = vsel %vm831, 1, 0
        %v848 = vsel %vm832, 1, 0
        %v849 = vsel %vm833, 1, 0
        %v850 = vsel %vm834, 1, 0
        %v851 = vsel %vm835, 1, 0
        %v852 = vsel %vm836, 1, 0
        %v853 = vsel %vm837, 1, 0
        %v854 = vsel %vm838, 1, 0
        %v855 = vsel %vm839, 1, 0
        %v856 = vsel %vm840, 1, 0
        %v857 = vsel %vm841, 1, 0
        %v858 = vcvt.s32.f32 %v842
        %v859 = vcvt.s32.f32 %v843
        %v860 = vcvt.s32.f32 %v844
        %v861 = vcvt.s32.f32 %v845
        %v862 = vcvt.s32.f32 %v846
        %v863 = vcvt.s32.f32 %v847
        %v864 = vcvt.s32.f32 %v848
        %v865 = vcvt.s32.f32 %v849
        %v866 = vcvt.s32.f32 %v850
        %v867 = vcvt.s32.f32 %v851
        %v868 = vcvt.s32.f32 %v852
        %v869 = vcvt.s32.f32 %v853
        %v870 = vcvt.s32.f32 %v854
        %v871 = vcvt.s32.f32 %v855
        %v872 = vcvt.s32.f32 %v856
        %v873 = vcvt.s32.f32 %v857
        %v874 = vmul.f32 %v777, %v858
        %v875 = vmul.f32 %v778, %v859
        %v876 = vmul.f32 %v779, %v860
        %v877 = vmul.f32 %v780, %v861
        %v878 = vmul.f32 %v781, %v862
        %v879 = vmul.f32 %v782, %v863
        %v880 = vmul.f32 %v783, %v864
        %v881 = vmul.f32 %v784, %v865
        %v882 = vmul.f32 %v785, %v866
        %v883 = vmul.f32 %v786, %v867
        %v884 = vmul.f32 %v787, %v868
        %v885 = vmul.f32 %v788, %v869
        %v886 = vmul.f32 %v789, %v870
        %v887 = vmul.f32 %v790, %v871
        %v888 = vmul.f32 %v791, %v872
        %v889 = vmul.f32 %v792, %v873
        %890 = vmatprep.subr.mxu0 0.0
        %891 = vmatpush1.msra.mxu0 %v405
        %892 = vmatprep.subr.mxu0 0.0
        %893 = vmatpush1.msra.mxu0 %v406
        %894 = vmatprep.subr.mxu0 0.0
        %895 = vmatpush1.msra.mxu0 %v407
        %896 = vmatprep.subr.mxu0 0.0
        %897 = vmatpush1.msra.mxu0 %v408
        %898 = vmatprep.subr.mxu0 0.0
        %899 = vmatpush1.msra.mxu0 %v409
        %900 = vmatprep.subr.mxu0 0.0
        %901 = vmatpush1.msra.mxu0 %v410
        %902 = vmatprep.subr.mxu0 0.0
        %903 = vmatpush1.msra.mxu0 %v411
        %904 = vmatprep.subr.mxu0 0.0
        %905 = vmatpush1.msra.mxu0 %v412
        %906 = vmatprep.subr.mxu0 0.0
        %907 = vmatpush1.msra.mxu0 %v413
        %908 = vmatprep.subr.mxu0 0.0
        %909 = vmatpush1.msra.mxu0 %v414
        %910 = vmatprep.subr.mxu0 0.0
        %911 = vmatpush1.msra.mxu0 %v415
        %912 = vmatprep.subr.mxu0 0.0
        %913 = vmatpush1.msra.mxu0 %v416
        %914 = vmatprep.subr.mxu0 0.0
        %915 = vmatpush1.msra.mxu0 %v417
        %916 = vmatprep.subr.mxu0 0.0
        %917 = vmatpush1.msra.mxu0 %v418
        %918 = vmatprep.subr.mxu0 0.0
        %919 = vmatpush1.msra.mxu0 %v419
        %920 = vmatprep.subr.mxu0 0.0
        %921 = vmatpush1.msra.mxu0 %v420
        %922 = vmatprep.subr.mxu0 0.0
        %923 = vmatpush1.msra.mxu0 0.0
        %924 = vmatprep.subr.mxu0 0.0
        %925 = vmatpush1.msra.mxu0 0.0
        %926 = vmatprep.subr.mxu0 0.0
        %927 = vmatpush1.msra.mxu0 0.0
        %928 = vmatprep.subr.mxu0 0.0
        %929 = vmatpush1.msra.mxu0 0.0
        %930 = vmatprep.subr.mxu0 0.0
        %931 = vmatpush1.msra.mxu0 0.0
        %932 = vmatprep.subr.mxu0 0.0
        %933 = vmatpush1.msra.mxu0 0.0
        %934 = vmatprep.subr.mxu0 0.0
        %935 = vmatpush1.msra.mxu0 0.0
        %936 = vmatprep.subr.mxu0 0.0
        %937 = vmatpush1.msra.mxu0 0.0
        %938 = vmatprep.subr.mxu0 0.0
        %939 = vmatpush1.msra.mxu0 0.0
        %940 = vmatprep.subr.mxu0 0.0
        %941 = vmatpush1.msra.mxu0 0.0
        %942 = vmatprep.subr.mxu0 0.0
        %943 = vmatpush1.msra.mxu0 0.0
        %944 = vmatprep.subr.mxu0 0.0
        %945 = vmatpush1.msra.mxu0 0.0
        %946 = vmatprep.subr.mxu0 0.0
        %947 = vmatpush1.msra.mxu0 0.0
        %948 = vmatprep.subr.mxu0 0.0
        %949 = vmatpush1.msra.mxu0 0.0
        %950 = vmatprep.subr.mxu0 0.0
        %951 = vmatpush1.msra.mxu0 0.0
        %952 = vmatprep.subr.mxu0 0.0
        %953 = vmatpush1.msra.mxu0 0.0
        %954 = vmatprep.mubr.f32.mxu0 0.0
        %955 = vmatmul.mubr.f32.gmra.mrb[0].mxu0 %v874
        %v956 = vpop.f32.mrb[0].mxu0
        %v957 = vadd.f32 0.0, %v956
        %v958 = vpop.f32.mrb[0].mxu0
        %959 = vmatprep.mubr.f32.mxu0 0.0
        %960 = vmatmul.mubr.f32.gmra.mrb[0].mxu0 %v875
        %v961 = vpop.f32.mrb[0].mxu0
        %v962 = vadd.f32 0.0, %v961
        %v963 = vpop.f32.mrb[0].mxu0
        %964 = vmatprep.mubr.f32.mxu0 0.0
        %965 = vmatmul.mubr.f32.gmra.mrb[0].mxu0 %v876
        %v966 = vpop.f32.mrb[0].mxu0
        %v967 = vadd.f32 0.0, %v966
        %v968 = vpop.f32.mrb[0].mxu0
        %969 = vmatprep.mubr.f32.mxu0 0.0
        %970 = vmatmul.mubr.f32.gmra.mrb[0].mxu0 %v877
        %v971 = vpop.f32.mrb[0].mxu0
        %v972 = vadd.f32 0.0, %v971
        %v973 = vpop.f32.mrb[0].mxu0
        %974 = vmatprep.mubr.f32.mxu0 0.0
        %975 = vmatmul.mubr.f32.gmra.mrb[0].mxu0 %v878
        %v976 = vpop.f32.mrb[0].mxu0
        %v977 = vadd.f32 0.0, %v976
        %v978 = vpop.f32.mrb[0].mxu0
        %979 = vmatprep.mubr.f32.mxu0 0.0
        %980 = vmatmul.mubr.f32.gmra.mrb[0].mxu0 %v879
        %v981 = vpop.f32.mrb[0].mxu0
        %v982 = vadd.f32 0.0, %v981
        %v983 = vpop.f32.mrb[0].mxu0
        %984 = vmatprep.mubr.f32.mxu0 0.0
        %985 = vmatmul.mubr.f32.gmra.mrb[0].mxu0 %v880
        %v986 = vpop.f32.mrb[0].mxu0
        %v987 = vadd.f32 0.0, %v986
        %v988 = vpop.f32.mrb[0].mxu0
        %989 = vmatprep.mubr.f32.mxu0 0.0
        %990 = vmatmul.mubr.f32.gmra.mrb[0].mxu0 %v881
        %v991 = vpop.f32.mrb[0].mxu0
        %v992 = vadd.f32 0.0, %v991
        %v993 = vpop.f32.mrb[0].mxu0
        %994 = vmatprep.mubr.f32.mxu0 0.0
        %995 = vmatmul.mubr.f32.gmra.mrb[0].mxu0 %v882
        %v996 = vpop.f32.mrb[0].mxu0
        %v997 = vadd.f32 0.0, %v996
        %v998 = vpop.f32.mrb[0].mxu0
        %999 = vmatprep.mubr.f32.mxu0 0.0
        %1000 = vmatmul.mubr.f32.gmra.mrb[0].mxu0 %v883
        %v1001 = vpop.f32.mrb[0].mxu0
        %v1002 = vadd.f32 0.0, %v1001
        %v1003 = vpop.f32.mrb[0].mxu0
        %1004 = vmatprep.mubr.f32.mxu0 0.0
        %1005 = vmatmul.mubr.f32.gmra.mrb[0].mxu0 %v884
        %v1006 = vpop.f32.mrb[0].mxu0
        %v1007 = vadd.f32 0.0, %v1006
        %v1008 = vpop.f32.mrb[0].mxu0
        %1009 = vmatprep.mubr.f32.mxu0 0.0
        %1010 = vmatmul.mubr.f32.gmra.mrb[0].mxu0 %v885
        %v1011 = vpop.f32.mrb[0].mxu0
        %v1012 = vadd.f32 0.0, %v1011
        %v1013 = vpop.f32.mrb[0].mxu0
        %1014 = vmatprep.mubr.f32.mxu0 0.0
        %1015 = vmatmul.mubr.f32.gmra.mrb[0].mxu0 %v886
        %v1016 = vpop.f32.mrb[0].mxu0
        %v1017 = vadd.f32 0.0, %v1016
        %v1018 = vpop.f32.mrb[0].mxu0
        %1019 = vmatprep.mubr.f32.mxu0 0.0
        %1020 = vmatmul.mubr.f32.gmra.mrb[0].mxu0 %v887
        %v1021 = vpop.f32.mrb[0].mxu0
        %v1022 = vadd.f32 0.0, %v1021
        %v1023 = vpop.f32.mrb[0].mxu0
        %1024 = vmatprep.mubr.f32.mxu0 0.0
        %1025 = vmatmul.mubr.f32.gmra.mrb[0].mxu0 %v888
        %v1026 = vpop.f32.mrb[0].mxu0
        %v1027 = vadd.f32 0.0, %v1026
        %v1028 = vpop.f32.mrb[0].mxu0
        %1029 = vmatprep.mubr.f32.mxu0 0.0
        %1030 = vmatmul.mubr.f32.gmra.mrb[0].mxu0 %v889
        %v1031 = vpop.f32.mrb[0].mxu0
        %v1032 = vadd.f32 0.0, %v1031
        %v1033 = vpop.f32.mrb[0].mxu0
        %1034 = vdwg.mxu0
        %v1035 = vlaneseq
        %v1036 = vshrl.u32 %v1035, 7
        %v1037 = vsub.s32 0, %v1036
        %v1038 = vrot.slane %v825, %v1037
        %v1039 = vmul.f32 %v957, %v1038
        %v1040 = vmul.f32 %v962, %v1038
        %v1041 = vmul.f32 %v967, %v1038
        %v1042 = vmul.f32 %v972, %v1038
        %v1043 = vmul.f32 %v977, %v1038
        %v1044 = vmul.f32 %v982, %v1038
        %v1045 = vmul.f32 %v987, %v1038
        %v1046 = vmul.f32 %v992, %v1038
        %v1047 = vmul.f32 %v997, %v1038
        %v1048 = vmul.f32 %v1002, %v1038
        %v1049 = vmul.f32 %v1007, %v1038
        %v1050 = vmul.f32 %v1012, %v1038
        %v1051 = vmul.f32 %v1017, %v1038
        %v1052 = vmul.f32 %v1022, %v1038
        %v1053 = vmul.f32 %v1027, %v1038
        %v1054 = vmul.f32 %v1032, %v1038
        %v1055 = vadd.f32 %v1039, 0.0
        %v1056 = vadd.f32 %v1040, 0.0
        %v1057 = vadd.f32 %v1041, 0.0
        %v1058 = vadd.f32 %v1042, 0.0
        %v1059 = vadd.f32 %v1043, 0.0
        %v1060 = vadd.f32 %v1044, 0.0
        %v1061 = vadd.f32 %v1045, 0.0
        %v1062 = vadd.f32 %v1046, 0.0
        %v1063 = vadd.f32 %v1047, 0.0
        %v1064 = vadd.f32 %v1048, 0.0
        %v1065 = vadd.f32 %v1049, 0.0
        %v1066 = vadd.f32 %v1050, 0.0
        %v1067 = vadd.f32 %v1051, 0.0
        %v1068 = vadd.f32 %v1052, 0.0
        %v1069 = vadd.f32 %v1053, 0.0
        %v1070 = vadd.f32 %v1054, 0.0
        %vm1071 = vcmp.eq.s32.totalorder %v809, 1
        %vm1072 = vcmp.eq.s32.totalorder %v810, 1
        %vm1073 = vcmp.eq.s32.totalorder %v811, 1
        %vm1074 = vcmp.eq.s32.totalorder %v812, 1
        %vm1075 = vcmp.eq.s32.totalorder %v813, 1
        %vm1076 = vcmp.eq.s32.totalorder %v814, 1
        %vm1077 = vcmp.eq.s32.totalorder %v815, 1
        %vm1078 = vcmp.eq.s32.totalorder %v816, 1
        %vm1079 = vcmp.eq.s32.totalorder %v817, 1
        %vm1080 = vcmp.eq.s32.totalorder %v818, 1
        %vm1081 = vcmp.eq.s32.totalorder %v819, 1
        %vm1082 = vcmp.eq.s32.totalorder %v820, 1
        %vm1083 = vcmp.eq.s32.totalorder %v821, 1
        %vm1084 = vcmp.eq.s32.totalorder %v822, 1
        %vm1085 = vcmp.eq.s32.totalorder %v823, 1
        %vm1086 = vcmp.eq.s32.totalorder %v824, 1
        %v1087 = vsel %vm1071, 1, 0
        %v1088 = vsel %vm1072, 1, 0
        %v1089 = vsel %vm1073, 1, 0
        %v1090 = vsel %vm1074, 1, 0
        %v1091 = vsel %vm1075, 1, 0
        %v1092 = vsel %vm1076, 1, 0
        %v1093 = vsel %vm1077, 1, 0
        %v1094 = vsel %vm1078, 1, 0
        %v1095 = vsel %vm1079, 1, 0
        %v1096 = vsel %vm1080, 1, 0
        %v1097 = vsel %vm1081, 1, 0
        %v1098 = vsel %vm1082, 1, 0
        %v1099 = vsel %vm1083, 1, 0
        %v1100 = vsel %vm1084, 1, 0
        %v1101 = vsel %vm1085, 1, 0
        %v1102 = vsel %vm1086, 1, 0
        %v1103 = vcvt.s32.f32 %v1087
        %v1104 = vcvt.s32.f32 %v1088
        %v1105 = vcvt.s32.f32 %v1089
        %v1106 = vcvt.s32.f32 %v1090
        %v1107 = vcvt.s32.f32 %v1091
        %v1108 = vcvt.s32.f32 %v1092
        %v1109 = vcvt.s32.f32 %v1093
        %v1110 = vcvt.s32.f32 %v1094
        %v1111 = vcvt.s32.f32 %v1095
        %v1112 = vcvt.s32.f32 %v1096
        %v1113 = vcvt.s32.f32 %v1097
        %v1114 = vcvt.s32.f32 %v1098
        %v1115 = vcvt.s32.f32 %v1099
        %v1116 = vcvt.s32.f32 %v1100
        %v1117 = vcvt.s32.f32 %v1101
        %v1118 = vcvt.s32.f32 %v1102
        %v1119 = vmul.f32 %v777, %v1103
        %v1120 = vmul.f32 %v778, %v1104
        %v1121 = vmul.f32 %v779, %v1105
        %v1122 = vmul.f32 %v780, %v1106
        %v1123 = vmul.f32 %v781, %v1107
        %v1124 = vmul.f32 %v782, %v1108
        %v1125 = vmul.f32 %v783, %v1109
        %v1126 = vmul.f32 %v784, %v1110
        %v1127 = vmul.f32 %v785, %v1111
        %v1128 = vmul.f32 %v786, %v1112
        %v1129 = vmul.f32 %v787, %v1113
        %v1130 = vmul.f32 %v788, %v1114
        %v1131 = vmul.f32 %v789, %v1115
        %v1132 = vmul.f32 %v790, %v1116
        %v1133 = vmul.f32 %v791, %v1117
        %v1134 = vmul.f32 %v792, %v1118
        %1135 = vmatprep.subr.mxu0 0.0
        %1136 = vmatpush1.msra.mxu0 %v405
        %1137 = vmatprep.subr.mxu0 0.0
        %1138 = vmatpush1.msra.mxu0 %v406
        %1139 = vmatprep.subr.mxu0 0.0
        %1140 = vmatpush1.msra.mxu0 %v407
        %1141 = vmatprep.subr.mxu0 0.0
        %1142 = vmatpush1.msra.mxu0 %v408
        %1143 = vmatprep.subr.mxu0 0.0
        %1144 = vmatpush1.msra.mxu0 %v409
        %1145 = vmatprep.subr.mxu0 0.0
        %1146 = vmatpush1.msra.mxu0 %v410
        %1147 = vmatprep.subr.mxu0 0.0
        %1148 = vmatpush1.msra.mxu0 %v411
        %1149 = vmatprep.subr.mxu0 0.0
        %1150 = vmatpush1.msra.mxu0 %v412
        %1151 = vmatprep.subr.mxu0 0.0
        %1152 = vmatpush1.msra.mxu0 %v413
        %1153 = vmatprep.subr.mxu0 0.0
        %1154 = vmatpush1.msra.mxu0 %v414
        %1155 = vmatprep.subr.mxu0 0.0
        %1156 = vmatpush1.msra.mxu0 %v415
        %1157 = vmatprep.subr.mxu0 0.0
        %1158 = vmatpush1.msra.mxu0 %v416
        %1159 = vmatprep.subr.mxu0 0.0
        %1160 = vmatpush1.msra.mxu0 %v417
        %1161 = vmatprep.subr.mxu0 0.0
        %1162 = vmatpush1.msra.mxu0 %v418
        %1163 = vmatprep.subr.mxu0 0.0
        %1164 = vmatpush1.msra.mxu0 %v419
        %1165 = vmatprep.subr.mxu0 0.0
        %1166 = vmatpush1.msra.mxu0 %v420
        %1167 = vmatprep.subr.mxu0 0.0
        %1168 = vmatpush1.msra.mxu0 0.0
        %1169 = vmatprep.subr.mxu0 0.0
        %1170 = vmatpush1.msra.mxu0 0.0
        %1171 = vmatprep.subr.mxu0 0.0
        %1172 = vmatpush1.msra.mxu0 0.0
        %1173 = vmatprep.subr.mxu0 0.0
        %1174 = vmatpush1.msra.mxu0 0.0
        %1175 = vmatprep.subr.mxu0 0.0
        %1176 = vmatpush1.msra.mxu0 0.0
        %1177 = vmatprep.subr.mxu0 0.0
        %1178 = vmatpush1.msra.mxu0 0.0
        %1179 = vmatprep.subr.mxu0 0.0
        %1180 = vmatpush1.msra.mxu0 0.0
        %1181 = vmatprep.subr.mxu0 0.0
        %1182 = vmatpush1.msra.mxu0 0.0
        %1183 = vmatprep.subr.mxu0 0.0
        %1184 = vmatpush1.msra.mxu0 0.0
        %1185 = vmatprep.subr.mxu0 0.0
        %1186 = vmatpush1.msra.mxu0 0.0
        %1187 = vmatprep.subr.mxu0 0.0
        %1188 = vmatpush1.msra.mxu0 0.0
        %1189 = vmatprep.subr.mxu0 0.0
        %1190 = vmatpush1.msra.mxu0 0.0
        %1191 = vmatprep.subr.mxu0 0.0
        %1192 = vmatpush1.msra.mxu0 0.0
        %1193 = vmatprep.subr.mxu0 0.0
        %1194 = vmatpush1.msra.mxu0 0.0
        %1195 = vmatprep.subr.mxu0 0.0
        %1196 = vmatpush1.msra.mxu0 0.0
        %1197 = vmatprep.subr.mxu0 0.0
        %1198 = vmatpush1.msra.mxu0 0.0
        %1199 = vmatprep.mubr.f32.mxu0 0.0
        %1200 = vmatmul.mubr.f32.gmra.mrb[0].mxu0 %v1119
        %v1201 = vpop.f32.mrb[0].mxu0
        %v1202 = vadd.f32 0.0, %v1201
        %v1203 = vpop.f32.mrb[0].mxu0
        %1204 = vmatprep.mubr.f32.mxu0 0.0
        %1205 = vmatmul.mubr.f32.gmra.mrb[0].mxu0 %v1120
        %v1206 = vpop.f32.mrb[0].mxu0
        %v1207 = vadd.f32 0.0, %v1206
        %v1208 = vpop.f32.mrb[0].mxu0
        %1209 = vmatprep.mubr.f32.mxu0 0.0
        %1210 = vmatmul.mubr.f32.gmra.mrb[0].mxu0 %v1121
        %v1211 = vpop.f32.mrb[0].mxu0
        %v1212 = vadd.f32 0.0, %v1211
        %v1213 = vpop.f32.mrb[0].mxu0
        %1214 = vmatprep.mubr.f32.mxu0 0.0
        %1215 = vmatmul.mubr.f32.gmra.mrb[0].mxu0 %v1122
        %v1216 = vpop.f32.mrb[0].mxu0
        %v1217 = vadd.f32 0.0, %v1216
        %v1218 = vpop.f32.mrb[0].mxu0
        %1219 = vmatprep.mubr.f32.mxu0 0.0
        %1220 = vmatmul.mubr.f32.gmra.mrb[0].mxu0 %v1123
        %v1221 = vpop.f32.mrb[0].mxu0
        %v1222 = vadd.f32 0.0, %v1221
        %v1223 = vpop.f32.mrb[0].mxu0
        %1224 = vmatprep.mubr.f32.mxu0 0.0
        %1225 = vmatmul.mubr.f32.gmra.mrb[0].mxu0 %v1124
        %v1226 = vpop.f32.mrb[0].mxu0
        %v1227 = vadd.f32 0.0, %v1226
        %v1228 = vpop.f32.mrb[0].mxu0
        %1229 = vmatprep.mubr.f32.mxu0 0.0
        %1230 = vmatmul.mubr.f32.gmra.mrb[0].mxu0 %v1125
        %v1231 = vpop.f32.mrb[0].mxu0
        %v1232 = vadd.f32 0.0, %v1231
        %v1233 = vpop.f32.mrb[0].mxu0
        %1234 = vmatprep.mubr.f32.mxu0 0.0
        %1235 = vmatmul.mubr.f32.gmra.mrb[0].mxu0 %v1126
        %v1236 = vpop.f32.mrb[0].mxu0
        %v1237 = vadd.f32 0.0, %v1236
        %v1238 = vpop.f32.mrb[0].mxu0
        %1239 = vmatprep.mubr.f32.mxu0 0.0
        %1240 = vmatmul.mubr.f32.gmra.mrb[0].mxu0 %v1127
        %v1241 = vpop.f32.mrb[0].mxu0
        %v1242 = vadd.f32 0.0, %v1241
        %v1243 = vpop.f32.mrb[0].mxu0
        %1244 = vmatprep.mubr.f32.mxu0 0.0
        %1245 = vmatmul.mubr.f32.gmra.mrb[0].mxu0 %v1128
        %v1246 = vpop.f32.mrb[0].mxu0
        %v1247 = vadd.f32 0.0, %v1246
        %v1248 = vpop.f32.mrb[0].mxu0
        %1249 = vmatprep.mubr.f32.mxu0 0.0
        %1250 = vmatmul.mubr.f32.gmra.mrb[0].mxu0 %v1129
        %v1251 = vpop.f32.mrb[0].mxu0
        %v1252 = vadd.f32 0.0, %v1251
        %v1253 = vpop.f32.mrb[0].mxu0
        %1254 = vmatprep.mubr.f32.mxu0 0.0
        %1255 = vmatmul.mubr.f32.gmra.mrb[0].mxu0 %v1130
        %v1256 = vpop.f32.mrb[0].mxu0
        %v1257 = vadd.f32 0.0, %v1256
        %v1258 = vpop.f32.mrb[0].mxu0
        %1259 = vmatprep.mubr.f32.mxu0 0.0
        %1260 = vmatmul.mubr.f32.gmra.mrb[0].mxu0 %v1131
        %v1261 = vpop.f32.mrb[0].mxu0
        %v1262 = vadd.f32 0.0, %v1261
        %v1263 = vpop.f32.mrb[0].mxu0
        %1264 = vmatprep.mubr.f32.mxu0 0.0
        %1265 = vmatmul.mubr.f32.gmra.mrb[0].mxu0 %v1132
        %v1266 = vpop.f32.mrb[0].mxu0
        %v1267 = vadd.f32 0.0, %v1266
        %v1268 = vpop.f32.mrb[0].mxu0
        %1269 = vmatprep.mubr.f32.mxu0 0.0
        %1270 = vmatmul.mubr.f32.gmra.mrb[0].mxu0 %v1133
        %v1271 = vpop.f32.mrb[0].mxu0
        %v1272 = vadd.f32 0.0, %v1271
        %v1273 = vpop.f32.mrb[0].mxu0
        %1274 = vmatprep.mubr.f32.mxu0 0.0
        %1275 = vmatmul.mubr.f32.gmra.mrb[0].mxu0 %v1134
        %v1276 = vpop.f32.mrb[0].mxu0
        %v1277 = vadd.f32 0.0, %v1276
        %v1278 = vpop.f32.mrb[0].mxu0
        %1279 = vdwg.mxu0
        %v1280 = vlaneseq
        %v1281 = vshrl.u32 %v1280, 7
        %v1282 = vsub.s32 1, %v1281
        %v1283 = vrot.slane %v825, %v1282
        %v1284 = vmul.f32 %v1202, %v1283
        %v1285 = vmul.f32 %v1207, %v1283
        %v1286 = vmul.f32 %v1212, %v1283
        %v1287 = vmul.f32 %v1217, %v1283
        %v1288 = vmul.f32 %v1222, %v1283
        %v1289 = vmul.f32 %v1227, %v1283
        %v1290 = vmul.f32 %v1232, %v1283
        %v1291 = vmul.f32 %v1237, %v1283
        %v1292 = vmul.f32 %v1242, %v1283
        %v1293 = vmul.f32 %v1247, %v1283
        %v1294 = vmul.f32 %v1252, %v1283
        %v1295 = vmul.f32 %v1257, %v1283
        %v1296 = vmul.f32 %v1262, %v1283
        %v1297 = vmul.f32 %v1267, %v1283
        %v1298 = vmul.f32 %v1272, %v1283
        %v1299 = vmul.f32 %v1277, %v1283
        %v1300 = vadd.f32 %v1055, %v1284
        %v1301 = vadd.f32 %v1056, %v1285
        %v1302 = vadd.f32 %v1057, %v1286
        %v1303 = vadd.f32 %v1058, %v1287
        %v1304 = vadd.f32 %v1059, %v1288
        %v1305 = vadd.f32 %v1060, %v1289
        %v1306 = vadd.f32 %v1061, %v1290
        %v1307 = vadd.f32 %v1062, %v1291
        %v1308 = vadd.f32 %v1063, %v1292
        %v1309 = vadd.f32 %v1064, %v1293
        %v1310 = vadd.f32 %v1065, %v1294
        %v1311 = vadd.f32 %v1066, %v1295
        %v1312 = vadd.f32 %v1067, %v1296
        %v1313 = vadd.f32 %v1068, %v1297
        %v1314 = vadd.f32 %v1069, %v1298
        %v1315 = vadd.f32 %v1070, %v1299
        %vm1316 = vcmp.eq.s32.totalorder %v809, 2
        %vm1317 = vcmp.eq.s32.totalorder %v810, 2
        %vm1318 = vcmp.eq.s32.totalorder %v811, 2
        %vm1319 = vcmp.eq.s32.totalorder %v812, 2
        %vm1320 = vcmp.eq.s32.totalorder %v813, 2
        %vm1321 = vcmp.eq.s32.totalorder %v814, 2
        %vm1322 = vcmp.eq.s32.totalorder %v815, 2
        %vm1323 = vcmp.eq.s32.totalorder %v816, 2
        %vm1324 = vcmp.eq.s32.totalorder %v817, 2
        %vm1325 = vcmp.eq.s32.totalorder %v818, 2
        %vm1326 = vcmp.eq.s32.totalorder %v819, 2
        %vm1327 = vcmp.eq.s32.totalorder %v820, 2
        %vm1328 = vcmp.eq.s32.totalorder %v821, 2
        %vm1329 = vcmp.eq.s32.totalorder %v822, 2
        %vm1330 = vcmp.eq.s32.totalorder %v823, 2
        %vm1331 = vcmp.eq.s32.totalorder %v824, 2
        %v1332 = vsel %vm1316, 1, 0
        %v1333 = vsel %vm1317, 1, 0
        %v1334 = vsel %vm1318, 1, 0
        %v1335 = vsel %vm1319, 1, 0
        %v1336 = vsel %vm1320, 1, 0
        %v1337 = vsel %vm1321, 1, 0
        %v1338 = vsel %vm1322, 1, 0
        %v1339 = vsel %vm1323, 1, 0
        %v1340 = vsel %vm1324, 1, 0
        %v1341 = vsel %vm1325, 1, 0
        %v1342 = vsel %vm1326, 1, 0
        %v1343 = vsel %vm1327, 1, 0
        %v1344 = vsel %vm1328, 1, 0
        %v1345 = vsel %vm1329, 1, 0
        %v1346 = vsel %vm1330, 1, 0
        %v1347 = vsel %vm1331, 1, 0
        %v1348 = vcvt.s32.f32 %v1332
        %v1349 = vcvt.s32.f32 %v1333
        %v1350 = vcvt.s32.f32 %v1334
        %v1351 = vcvt.s32.f32 %v1335
        %v1352 = vcvt.s32.f32 %v1336
        %v1353 = vcvt.s32.f32 %v1337
        %v1354 = vcvt.s32.f32 %v1338
        %v1355 = vcvt.s32.f32 %v1339
        %v1356 = vcvt.s32.f32 %v1340
        %v1357 = vcvt.s32.f32 %v1341
        %v1358 = vcvt.s32.f32 %v1342
        %v1359 = vcvt.s32.f32 %v1343
        %v1360 = vcvt.s32.f32 %v1344
        %v1361 = vcvt.s32.f32 %v1345
        %v1362 = vcvt.s32.f32 %v1346
        %v1363 = vcvt.s32.f32 %v1347
        %v1364 = vmul.f32 %v777, %v1348
        %v1365 = vmul.f32 %v778, %v1349
        %v1366 = vmul.f32 %v779, %v1350
        %v1367 = vmul.f32 %v780, %v1351
        %v1368 = vmul.f32 %v781, %v1352
        %v1369 = vmul.f32 %v782, %v1353
        %v1370 = vmul.f32 %v783, %v1354
        %v1371 = vmul.f32 %v784, %v1355
        %v1372 = vmul.f32 %v785, %v1356
        %v1373 = vmul.f32 %v786, %v1357
        %v1374 = vmul.f32 %v787, %v1358
        %v1375 = vmul.f32 %v788, %v1359
        %v1376 = vmul.f32 %v789, %v1360
        %v1377 = vmul.f32 %v790, %v1361
        %v1378 = vmul.f32 %v791, %v1362
        %v1379 = vmul.f32 %v792, %v1363
        %1380 = vmatprep.subr.mxu0 0.0
        %1381 = vmatpush1.msra.mxu0 %v405
        %1382 = vmatprep.subr.mxu0 0.0
        %1383 = vmatpush1.msra.mxu0 %v406
        %1384 = vmatprep.subr.mxu0 0.0
        %1385 = vmatpush1.msra.mxu0 %v407
        %1386 = vmatprep.subr.mxu0 0.0
        %1387 = vmatpush1.msra.mxu0 %v408
        %1388 = vmatprep.subr.mxu0 0.0
        %1389 = vmatpush1.msra.mxu0 %v409
        %1390 = vmatprep.subr.mxu0 0.0
        %1391 = vmatpush1.msra.mxu0 %v410
        %1392 = vmatprep.subr.mxu0 0.0
        %1393 = vmatpush1.msra.mxu0 %v411
        %1394 = vmatprep.subr.mxu0 0.0
        %1395 = vmatpush1.msra.mxu0 %v412
        %1396 = vmatprep.subr.mxu0 0.0
        %1397 = vmatpush1.msra.mxu0 %v413
        %1398 = vmatprep.subr.mxu0 0.0
        %1399 = vmatpush1.msra.mxu0 %v414
        %1400 = vmatprep.subr.mxu0 0.0
        %1401 = vmatpush1.msra.mxu0 %v415
        %1402 = vmatprep.subr.mxu0 0.0
        %1403 = vmatpush1.msra.mxu0 %v416
        %1404 = vmatprep.subr.mxu0 0.0
        %1405 = vmatpush1.msra.mxu0 %v417
        %1406 = vmatprep.subr.mxu0 0.0
        %1407 = vmatpush1.msra.mxu0 %v418
        %1408 = vmatprep.subr.mxu0 0.0
        %1409 = vmatpush1.msra.mxu0 %v419
        %1410 = vmatprep.subr.mxu0 0.0
        %1411 = vmatpush1.msra.mxu0 %v420
        %1412 = vmatprep.subr.mxu0 0.0
        %1413 = vmatpush1.msra.mxu0 0.0
        %1414 = vmatprep.subr.mxu0 0.0
        %1415 = vmatpush1.msra.mxu0 0.0
        %1416 = vmatprep.subr.mxu0 0.0
        %1417 = vmatpush1.msra.mxu0 0.0
        %1418 = vmatprep.subr.mxu0 0.0
        %1419 = vmatpush1.msra.mxu0 0.0
        %1420 = vmatprep.subr.mxu0 0.0
        %1421 = vmatpush1.msra.mxu0 0.0
        %1422 = vmatprep.subr.mxu0 0.0
        %1423 = vmatpush1.msra.mxu0 0.0
        %1424 = vmatprep.subr.mxu0 0.0
        %1425 = vmatpush1.msra.mxu0 0.0
        %1426 = vmatprep.subr.mxu0 0.0
        %1427 = vmatpush1.msra.mxu0 0.0
        %1428 = vmatprep.subr.mxu0 0.0
        %1429 = vmatpush1.msra.mxu0 0.0
        %1430 = vmatprep.subr.mxu0 0.0
        %1431 = vmatpush1.msra.mxu0 0.0
        %1432 = vmatprep.subr.mxu0 0.0
        %1433 = vmatpush1.msra.mxu0 0.0
        %1434 = vmatprep.subr.mxu0 0.0
        %1435 = vmatpush1.msra.mxu0 0.0
        %1436 = vmatprep.subr.mxu0 0.0
        %1437 = vmatpush1.msra.mxu0 0.0
        %1438 = vmatprep.subr.mxu0 0.0
        %1439 = vmatpush1.msra.mxu0 0.0
        %1440 = vmatprep.subr.mxu0 0.0
        %1441 = vmatpush1.msra.mxu0 0.0
        %1442 = vmatprep.subr.mxu0 0.0
        %1443 = vmatpush1.msra.mxu0 0.0
        %1444 = vmatprep.mubr.f32.mxu0 0.0
        %1445 = vmatmul.mubr.f32.gmra.mrb[0].mxu0 %v1364
        %v1446 = vpop.f32.mrb[0].mxu0
        %v1447 = vadd.f32 0.0, %v1446
        %v1448 = vpop.f32.mrb[0].mxu0
        %1449 = vmatprep.mubr.f32.mxu0 0.0
        %1450 = vmatmul.mubr.f32.gmra.mrb[0].mxu0 %v1365
        %v1451 = vpop.f32.mrb[0].mxu0
        %v1452 = vadd.f32 0.0, %v1451
        %v1453 = vpop.f32.mrb[0].mxu0
        %1454 = vmatprep.mubr.f32.mxu0 0.0
        %1455 = vmatmul.mubr.f32.gmra.mrb[0].mxu0 %v1366
        %v1456 = vpop.f32.mrb[0].mxu0
        %v1457 = vadd.f32 0.0, %v1456
        %v1458 = vpop.f32.mrb[0].mxu0
        %1459 = vmatprep.mubr.f32.mxu0 0.0
        %1460 = vmatmul.mubr.f32.gmra.mrb[0].mxu0 %v1367
        %v1461 = vpop.f32.mrb[0].mxu0
        %v1462 = vadd.f32 0.0, %v1461
        %v1463 = vpop.f32.mrb[0].mxu0
        %1464 = vmatprep.mubr.f32.mxu0 0.0
        %1465 = vmatmul.mubr.f32.gmra.mrb[0].mxu0 %v1368
        %v1466 = vpop.f32.mrb[0].mxu0
        %v1467 = vadd.f32 0.0, %v1466
        %v1468 = vpop.f32.mrb[0].mxu0
        %1469 = vmatprep.mubr.f32.mxu0 0.0
        %1470 = vmatmul.mubr.f32.gmra.mrb[0].mxu0 %v1369
        %v1471 = vpop.f32.mrb[0].mxu0
        %v1472 = vadd.f32 0.0, %v1471
        %v1473 = vpop.f32.mrb[0].mxu0
        %1474 = vmatprep.mubr.f32.mxu0 0.0
        %1475 = vmatmul.mubr.f32.gmra.mrb[0].mxu0 %v1370
        %v1476 = vpop.f32.mrb[0].mxu0
        %v1477 = vadd.f32 0.0, %v1476
        %v1478 = vpop.f32.mrb[0].mxu0
        %1479 = vmatprep.mubr.f32.mxu0 0.0
        %1480 = vmatmul.mubr.f32.gmra.mrb[0].mxu0 %v1371
        %v1481 = vpop.f32.mrb[0].mxu0
        %v1482 = vadd.f32 0.0, %v1481
        %v1483 = vpop.f32.mrb[0].mxu0
        %1484 = vmatprep.mubr.f32.mxu0 0.0
        %1485 = vmatmul.mubr.f32.gmra.mrb[0].mxu0 %v1372
        %v1486 = vpop.f32.mrb[0].mxu0
        %v1487 = vadd.f32 0.0, %v1486
        %v1488 = vpop.f32.mrb[0].mxu0
        %1489 = vmatprep.mubr.f32.mxu0 0.0
        %1490 = vmatmul.mubr.f32.gmra.mrb[0].mxu0 %v1373
        %v1491 = vpop.f32.mrb[0].mxu0
        %v1492 = vadd.f32 0.0, %v1491
        %v1493 = vpop.f32.mrb[0].mxu0
        %1494 = vmatprep.mubr.f32.mxu0 0.0
        %1495 = vmatmul.mubr.f32.gmra.mrb[0].mxu0 %v1374
        %v1496 = vpop.f32.mrb[0].mxu0
        %v1497 = vadd.f32 0.0, %v1496
        %v1498 = vpop.f32.mrb[0].mxu0
        %1499 = vmatprep.mubr.f32.mxu0 0.0
        %1500 = vmatmul.mubr.f32.gmra.mrb[0].mxu0 %v1375
        %v1501 = vpop.f32.mrb[0].mxu0
        %v1502 = vadd.f32 0.0, %v1501
        %v1503 = vpop.f32.mrb[0].mxu0
        %1504 = vmatprep.mubr.f32.mxu0 0.0
        %1505 = vmatmul.mubr.f32.gmra.mrb[0].mxu0 %v1376
        %v1506 = vpop.f32.mrb[0].mxu0
        %v1507 = vadd.f32 0.0, %v1506
        %v1508 = vpop.f32.mrb[0].mxu0
        %1509 = vmatprep.mubr.f32.mxu0 0.0
        %1510 = vmatmul.mubr.f32.gmra.mrb[0].mxu0 %v1377
        %v1511 = vpop.f32.mrb[0].mxu0
        %v1512 = vadd.f32 0.0, %v1511
        %v1513 = vpop.f32.mrb[0].mxu0
        %1514 = vmatprep.mubr.f32.mxu0 0.0
        %1515 = vmatmul.mubr.f32.gmra.mrb[0].mxu0 %v1378
        %v1516 = vpop.f32.mrb[0].mxu0
        %v1517 = vadd.f32 0.0, %v1516
        %v1518 = vpop.f32.mrb[0].mxu0
        %1519 = vmatprep.mubr.f32.mxu0 0.0
        %1520 = vmatmul.mubr.f32.gmra.mrb[0].mxu0 %v1379
        %v1521 = vpop.f32.mrb[0].mxu0
        %v1522 = vadd.f32 0.0, %v1521
        %v1523 = vpop.f32.mrb[0].mxu0
        %1524 = vdwg.mxu0
        %v1525 = vlaneseq
        %v1526 = vshrl.u32 %v1525, 7
        %v1527 = vsub.s32 2, %v1526
        %v1528 = vrot.slane %v825, %v1527
        %v1529 = vmul.f32 %v1447, %v1528
        %v1530 = vmul.f32 %v1452, %v1528
        %v1531 = vmul.f32 %v1457, %v1528
        %v1532 = vmul.f32 %v1462, %v1528
        %v1533 = vmul.f32 %v1467, %v1528
        %v1534 = vmul.f32 %v1472, %v1528
        %v1535 = vmul.f32 %v1477, %v1528
        %v1536 = vmul.f32 %v1482, %v1528
        %v1537 = vmul.f32 %v1487, %v1528
        %v1538 = vmul.f32 %v1492, %v1528
        %v1539 = vmul.f32 %v1497, %v1528
        %v1540 = vmul.f32 %v1502, %v1528
        %v1541 = vmul.f32 %v1507, %v1528
        %v1542 = vmul.f32 %v1512, %v1528
        %v1543 = vmul.f32 %v1517, %v1528
        %v1544 = vmul.f32 %v1522, %v1528
        %v1545 = vadd.f32 %v1300, %v1529
        %v1546 = vadd.f32 %v1301, %v1530
        %v1547 = vadd.f32 %v1302, %v1531
        %v1548 = vadd.f32 %v1303, %v1532
        %v1549 = vadd.f32 %v1304, %v1533
        %v1550 = vadd.f32 %v1305, %v1534
        %v1551 = vadd.f32 %v1306, %v1535
        %v1552 = vadd.f32 %v1307, %v1536
        %v1553 = vadd.f32 %v1308, %v1537
        %v1554 = vadd.f32 %v1309, %v1538
        %v1555 = vadd.f32 %v1310, %v1539
        %v1556 = vadd.f32 %v1311, %v1540
        %v1557 = vadd.f32 %v1312, %v1541
        %v1558 = vadd.f32 %v1313, %v1542
        %v1559 = vadd.f32 %v1314, %v1543
        %v1560 = vadd.f32 %v1315, %v1544
        %vm1561 = vcmp.eq.s32.totalorder %v809, 3
        %vm1562 = vcmp.eq.s32.totalorder %v810, 3
        %vm1563 = vcmp.eq.s32.totalorder %v811, 3
        %vm1564 = vcmp.eq.s32.totalorder %v812, 3
        %vm1565 = vcmp.eq.s32.totalorder %v813, 3
        %vm1566 = vcmp.eq.s32.totalorder %v814, 3
        %vm1567 = vcmp.eq.s32.totalorder %v815, 3
        %vm1568 = vcmp.eq.s32.totalorder %v816, 3
        %vm1569 = vcmp.eq.s32.totalorder %v817, 3
        %vm1570 = vcmp.eq.s32.totalorder %v818, 3
        %vm1571 = vcmp.eq.s32.totalorder %v819, 3
        %vm1572 = vcmp.eq.s32.totalorder %v820, 3
        %vm1573 = vcmp.eq.s32.totalorder %v821, 3
        %vm1574 = vcmp.eq.s32.totalorder %v822, 3
        %vm1575 = vcmp.eq.s32.totalorder %v823, 3
        %vm1576 = vcmp.eq.s32.totalorder %v824, 3
        %v1577 = vsel %vm1561, 1, 0
        %v1578 = vsel %vm1562, 1, 0
        %v1579 = vsel %vm1563, 1, 0
        %v1580 = vsel %vm1564, 1, 0
        %v1581 = vsel %vm1565, 1, 0
        %v1582 = vsel %vm1566, 1, 0
        %v1583 = vsel %vm1567, 1, 0
        %v1584 = vsel %vm1568, 1, 0
        %v1585 = vsel %vm1569, 1, 0
        %v1586 = vsel %vm1570, 1, 0
        %v1587 = vsel %vm1571, 1, 0
        %v1588 = vsel %vm1572, 1, 0
        %v1589 = vsel %vm1573, 1, 0
        %v1590 = vsel %vm1574, 1, 0
        %v1591 = vsel %vm1575, 1, 0
        %v1592 = vsel %vm1576, 1, 0
        %v1593 = vcvt.s32.f32 %v1577
        %v1594 = vcvt.s32.f32 %v1578
        %v1595 = vcvt.s32.f32 %v1579
        %v1596 = vcvt.s32.f32 %v1580
        %v1597 = vcvt.s32.f32 %v1581
        %v1598 = vcvt.s32.f32 %v1582
        %v1599 = vcvt.s32.f32 %v1583
        %v1600 = vcvt.s32.f32 %v1584
        %v1601 = vcvt.s32.f32 %v1585
        %v1602 = vcvt.s32.f32 %v1586
        %v1603 = vcvt.s32.f32 %v1587
        %v1604 = vcvt.s32.f32 %v1588
        %v1605 = vcvt.s32.f32 %v1589
        %v1606 = vcvt.s32.f32 %v1590
        %v1607 = vcvt.s32.f32 %v1591
        %v1608 = vcvt.s32.f32 %v1592
        %v1609 = vmul.f32 %v777, %v1593
        %v1610 = vmul.f32 %v778, %v1594
        %v1611 = vmul.f32 %v779, %v1595
        %v1612 = vmul.f32 %v780, %v1596
        %v1613 = vmul.f32 %v781, %v1597
        %v1614 = vmul.f32 %v782, %v1598
        %v1615 = vmul.f32 %v783, %v1599
        %v1616 = vmul.f32 %v784, %v1600
        %v1617 = vmul.f32 %v785, %v1601
        %v1618 = vmul.f32 %v786, %v1602
        %v1619 = vmul.f32 %v787, %v1603
        %v1620 = vmul.f32 %v788, %v1604
        %v1621 = vmul.f32 %v789, %v1605
        %v1622 = vmul.f32 %v790, %v1606
        %v1623 = vmul.f32 %v791, %v1607
        %v1624 = vmul.f32 %v792, %v1608
        %1625 = vmatprep.subr.mxu0 0.0
        %1626 = vmatpush1.msra.mxu0 %v405
        %1627 = vmatprep.subr.mxu0 0.0
        %1628 = vmatpush1.msra.mxu0 %v406
        %1629 = vmatprep.subr.mxu0 0.0
        %1630 = vmatpush1.msra.mxu0 %v407
        %1631 = vmatprep.subr.mxu0 0.0
        %1632 = vmatpush1.msra.mxu0 %v408
        %1633 = vmatprep.subr.mxu0 0.0
        %1634 = vmatpush1.msra.mxu0 %v409
        %1635 = vmatprep.subr.mxu0 0.0
        %1636 = vmatpush1.msra.mxu0 %v410
        %1637 = vmatprep.subr.mxu0 0.0
        %1638 = vmatpush1.msra.mxu0 %v411
        %1639 = vmatprep.subr.mxu0 0.0
        %1640 = vmatpush1.msra.mxu0 %v412
        %1641 = vmatprep.subr.mxu0 0.0
        %1642 = vmatpush1.msra.mxu0 %v413
        %1643 = vmatprep.subr.mxu0 0.0
        %1644 = vmatpush1.msra.mxu0 %v414
        %1645 = vmatprep.subr.mxu0 0.0
        %1646 = vmatpush1.msra.mxu0 %v415
        %1647 = vmatprep.subr.mxu0 0.0
        %1648 = vmatpush1.msra.mxu0 %v416
        %1649 = vmatprep.subr.mxu0 0.0
        %1650 = vmatpush1.msra.mxu0 %v417
        %1651 = vmatprep.subr.mxu0 0.0
        %1652 = vmatpush1.msra.mxu0 %v418
        %1653 = vmatprep.subr.mxu0 0.0
        %1654 = vmatpush1.msra.mxu0 %v419
        %1655 = vmatprep.subr.mxu0 0.0
        %1656 = vmatpush1.msra.mxu0 %v420
        %1657 = vmatprep.subr.mxu0 0.0
        %1658 = vmatpush1.msra.mxu0 0.0
        %1659 = vmatprep.subr.mxu0 0.0
        %1660 = vmatpush1.msra.mxu0 0.0
        %1661 = vmatprep.subr.mxu0 0.0
        %1662 = vmatpush1.msra.mxu0 0.0
        %1663 = vmatprep.subr.mxu0 0.0
        %1664 = vmatpush1.msra.mxu0 0.0
        %1665 = vmatprep.subr.mxu0 0.0
        %1666 = vmatpush1.msra.mxu0 0.0
        %1667 = vmatprep.subr.mxu0 0.0
        %1668 = vmatpush1.msra.mxu0 0.0
        %1669 = vmatprep.subr.mxu0 0.0
        %1670 = vmatpush1.msra.mxu0 0.0
        %1671 = vmatprep.subr.mxu0 0.0
        %1672 = vmatpush1.msra.mxu0 0.0
        %1673 = vmatprep.subr.mxu0 0.0
        %1674 = vmatpush1.msra.mxu0 0.0
        %1675 = vmatprep.subr.mxu0 0.0
        %1676 = vmatpush1.msra.mxu0 0.0
        %1677 = vmatprep.subr.mxu0 0.0
        %1678 = vmatpush1.msra.mxu0 0.0
        %1679 = vmatprep.subr.mxu0 0.0
        %1680 = vmatpush1.msra.mxu0 0.0
        %1681 = vmatprep.subr.mxu0 0.0
        %1682 = vmatpush1.msra.mxu0 0.0
        %1683 = vmatprep.subr.mxu0 0.0
        %1684 = vmatpush1.msra.mxu0 0.0
        %1685 = vmatprep.subr.mxu0 0.0
        %1686 = vmatpush1.msra.mxu0 0.0
        %1687 = vmatprep.subr.mxu0 0.0
        %1688 = vmatpush1.msra.mxu0 0.0
        %1689 = vmatprep.mubr.f32.mxu0 0.0
        %1690 = vmatmul.mubr.f32.gmra.mrb[0].mxu0 %v1609
        %v1691 = vpop.f32.mrb[0].mxu0
        %v1692 = vadd.f32 0.0, %v1691
        %v1693 = vpop.f32.mrb[0].mxu0
        %1694 = vmatprep.mubr.f32.mxu0 0.0
        %1695 = vmatmul.mubr.f32.gmra.mrb[0].mxu0 %v1610
        %v1696 = vpop.f32.mrb[0].mxu0
        %v1697 = vadd.f32 0.0, %v1696
        %v1698 = vpop.f32.mrb[0].mxu0
        %1699 = vmatprep.mubr.f32.mxu0 0.0
        %1700 = vmatmul.mubr.f32.gmra.mrb[0].mxu0 %v1611
        %v1701 = vpop.f32.mrb[0].mxu0
        %v1702 = vadd.f32 0.0, %v1701
        %v1703 = vpop.f32.mrb[0].mxu0
        %1704 = vmatprep.mubr.f32.mxu0 0.0
        %1705 = vmatmul.mubr.f32.gmra.mrb[0].mxu0 %v1612
        %v1706 = vpop.f32.mrb[0].mxu0
        %v1707 = vadd.f32 0.0, %v1706
        %v1708 = vpop.f32.mrb[0].mxu0
        %1709 = vmatprep.mubr.f32.mxu0 0.0
        %1710 = vmatmul.mubr.f32.gmra.mrb[0].mxu0 %v1613
        %v1711 = vpop.f32.mrb[0].mxu0
        %v1712 = vadd.f32 0.0, %v1711
        %v1713 = vpop.f32.mrb[0].mxu0
        %1714 = vmatprep.mubr.f32.mxu0 0.0
        %1715 = vmatmul.mubr.f32.gmra.mrb[0].mxu0 %v1614
        %v1716 = vpop.f32.mrb[0].mxu0
        %v1717 = vadd.f32 0.0, %v1716
        %v1718 = vpop.f32.mrb[0].mxu0
        %1719 = vmatprep.mubr.f32.mxu0 0.0
        %1720 = vmatmul.mubr.f32.gmra.mrb[0].mxu0 %v1615
        %v1721 = vpop.f32.mrb[0].mxu0
        %v1722 = vadd.f32 0.0, %v1721
        %v1723 = vpop.f32.mrb[0].mxu0
        %1724 = vmatprep.mubr.f32.mxu0 0.0
        %1725 = vmatmul.mubr.f32.gmra.mrb[0].mxu0 %v1616
        %v1726 = vpop.f32.mrb[0].mxu0
        %v1727 = vadd.f32 0.0, %v1726
        %v1728 = vpop.f32.mrb[0].mxu0
        %1729 = vmatprep.mubr.f32.mxu0 0.0
        %1730 = vmatmul.mubr.f32.gmra.mrb[0].mxu0 %v1617
        %v1731 = vpop.f32.mrb[0].mxu0
        %v1732 = vadd.f32 0.0, %v1731
        %v1733 = vpop.f32.mrb[0].mxu0
        %1734 = vmatprep.mubr.f32.mxu0 0.0
        %1735 = vmatmul.mubr.f32.gmra.mrb[0].mxu0 %v1618
        %v1736 = vpop.f32.mrb[0].mxu0
        %v1737 = vadd.f32 0.0, %v1736
        %v1738 = vpop.f32.mrb[0].mxu0
        %1739 = vmatprep.mubr.f32.mxu0 0.0
        %1740 = vmatmul.mubr.f32.gmra.mrb[0].mxu0 %v1619
        %v1741 = vpop.f32.mrb[0].mxu0
        %v1742 = vadd.f32 0.0, %v1741
        %v1743 = vpop.f32.mrb[0].mxu0
        %1744 = vmatprep.mubr.f32.mxu0 0.0
        %1745 = vmatmul.mubr.f32.gmra.mrb[0].mxu0 %v1620
        %v1746 = vpop.f32.mrb[0].mxu0
        %v1747 = vadd.f32 0.0, %v1746
        %v1748 = vpop.f32.mrb[0].mxu0
        %1749 = vmatprep.mubr.f32.mxu0 0.0
        %1750 = vmatmul.mubr.f32.gmra.mrb[0].mxu0 %v1621
        %v1751 = vpop.f32.mrb[0].mxu0
        %v1752 = vadd.f32 0.0, %v1751
        %v1753 = vpop.f32.mrb[0].mxu0
        %1754 = vmatprep.mubr.f32.mxu0 0.0
        %1755 = vmatmul.mubr.f32.gmra.mrb[0].mxu0 %v1622
        %v1756 = vpop.f32.mrb[0].mxu0
        %v1757 = vadd.f32 0.0, %v1756
        %v1758 = vpop.f32.mrb[0].mxu0
        %1759 = vmatprep.mubr.f32.mxu0 0.0
        %1760 = vmatmul.mubr.f32.gmra.mrb[0].mxu0 %v1623
        %v1761 = vpop.f32.mrb[0].mxu0
        %v1762 = vadd.f32 0.0, %v1761
        %v1763 = vpop.f32.mrb[0].mxu0
        %1764 = vmatprep.mubr.f32.mxu0 0.0
        %1765 = vmatmul.mubr.f32.gmra.mrb[0].mxu0 %v1624
        %v1766 = vpop.f32.mrb[0].mxu0
        %v1767 = vadd.f32 0.0, %v1766
        %v1768 = vpop.f32.mrb[0].mxu0
        %1769 = vdwg.mxu0
        %v1770 = vlaneseq
        %v1771 = vshrl.u32 %v1770, 7
        %v1772 = vsub.s32 3, %v1771
        %v1773 = vrot.slane %v825, %v1772
        %v1774 = vmul.f32 %v1692, %v1773
        %v1775 = vmul.f32 %v1697, %v1773
        %v1776 = vmul.f32 %v1702, %v1773
        %v1777 = vmul.f32 %v1707, %v1773
        %v1778 = vmul.f32 %v1712, %v1773
        %v1779 = vmul.f32 %v1717, %v1773
        %v1780 = vmul.f32 %v1722, %v1773
        %v1781 = vmul.f32 %v1727, %v1773
        %v1782 = vmul.f32 %v1732, %v1773
        %v1783 = vmul.f32 %v1737, %v1773
        %v1784 = vmul.f32 %v1742, %v1773
        %v1785 = vmul.f32 %v1747, %v1773
        %v1786 = vmul.f32 %v1752, %v1773
        %v1787 = vmul.f32 %v1757, %v1773
        %v1788 = vmul.f32 %v1762, %v1773
        %v1789 = vmul.f32 %v1767, %v1773
        %v1790 = vadd.f32 %v1545, %v1774
        %v1791 = vadd.f32 %v1546, %v1775
        %v1792 = vadd.f32 %v1547, %v1776
        %v1793 = vadd.f32 %v1548, %v1777
        %v1794 = vadd.f32 %v1549, %v1778
        %v1795 = vadd.f32 %v1550, %v1779
        %v1796 = vadd.f32 %v1551, %v1780
        %v1797 = vadd.f32 %v1552, %v1781
        %v1798 = vadd.f32 %v1553, %v1782
        %v1799 = vadd.f32 %v1554, %v1783
        %v1800 = vadd.f32 %v1555, %v1784
        %v1801 = vadd.f32 %v1556, %v1785
        %v1802 = vadd.f32 %v1557, %v1786
        %v1803 = vadd.f32 %v1558, %v1787
        %v1804 = vadd.f32 %v1559, %v1788
        %v1805 = vadd.f32 %v1560, %v1789
        %vm1806 = vcmp.eq.s32.totalorder %v809, 4
        %vm1807 = vcmp.eq.s32.totalorder %v810, 4
        %vm1808 = vcmp.eq.s32.totalorder %v811, 4
        %vm1809 = vcmp.eq.s32.totalorder %v812, 4
        %vm1810 = vcmp.eq.s32.totalorder %v813, 4
        %vm1811 = vcmp.eq.s32.totalorder %v814, 4
        %vm1812 = vcmp.eq.s32.totalorder %v815, 4
        %vm1813 = vcmp.eq.s32.totalorder %v816, 4
        %vm1814 = vcmp.eq.s32.totalorder %v817, 4
        %vm1815 = vcmp.eq.s32.totalorder %v818, 4
        %vm1816 = vcmp.eq.s32.totalorder %v819, 4
        %vm1817 = vcmp.eq.s32.totalorder %v820, 4
        %vm1818 = vcmp.eq.s32.totalorder %v821, 4
        %vm1819 = vcmp.eq.s32.totalorder %v822, 4
        %vm1820 = vcmp.eq.s32.totalorder %v823, 4
        %vm1821 = vcmp.eq.s32.totalorder %v824, 4
        %v1822 = vsel %vm1806, 1, 0
        %v1823 = vsel %vm1807, 1, 0
        %v1824 = vsel %vm1808, 1, 0
        %v1825 = vsel %vm1809, 1, 0
        %v1826 = vsel %vm1810, 1, 0
        %v1827 = vsel %vm1811, 1, 0
        %v1828 = vsel %vm1812, 1, 0
        %v1829 = vsel %vm1813, 1, 0
        %v1830 = vsel %vm1814, 1, 0
        %v1831 = vsel %vm1815, 1, 0
        %v1832 = vsel %vm1816, 1, 0
        %v1833 = vsel %vm1817, 1, 0
        %v1834 = vsel %vm1818, 1, 0
        %v1835 = vsel %vm1819, 1, 0
        %v1836 = vsel %vm1820, 1, 0
        %v1837 = vsel %vm1821, 1, 0
        %v1838 = vcvt.s32.f32 %v1822
        %v1839 = vcvt.s32.f32 %v1823
        %v1840 = vcvt.s32.f32 %v1824
        %v1841 = vcvt.s32.f32 %v1825
        %v1842 = vcvt.s32.f32 %v1826
        %v1843 = vcvt.s32.f32 %v1827
        %v1844 = vcvt.s32.f32 %v1828
        %v1845 = vcvt.s32.f32 %v1829
        %v1846 = vcvt.s32.f32 %v1830
        %v1847 = vcvt.s32.f32 %v1831
        %v1848 = vcvt.s32.f32 %v1832
        %v1849 = vcvt.s32.f32 %v1833
        %v1850 = vcvt.s32.f32 %v1834
        %v1851 = vcvt.s32.f32 %v1835
        %v1852 = vcvt.s32.f32 %v1836
        %v1853 = vcvt.s32.f32 %v1837
        %v1854 = vmul.f32 %v777, %v1838
        %v1855 = vmul.f32 %v778, %v1839
        %v1856 = vmul.f32 %v779, %v1840
        %v1857 = vmul.f32 %v780, %v1841
        %v1858 = vmul.f32 %v781, %v1842
        %v1859 = vmul.f32 %v782, %v1843
        %v1860 = vmul.f32 %v783, %v1844
        %v1861 = vmul.f32 %v784, %v1845
        %v1862 = vmul.f32 %v785, %v1846
        %v1863 = vmul.f32 %v786, %v1847
        %v1864 = vmul.f32 %v787, %v1848
        %v1865 = vmul.f32 %v788, %v1849
        %v1866 = vmul.f32 %v789, %v1850
        %v1867 = vmul.f32 %v790, %v1851
        %v1868 = vmul.f32 %v791, %v1852
        %v1869 = vmul.f32 %v792, %v1853
        %1870 = vmatprep.subr.mxu0 0.0
        %1871 = vmatpush1.msra.mxu0 %v405
        %1872 = vmatprep.subr.mxu0 0.0
        %1873 = vmatpush1.msra.mxu0 %v406
        %1874 = vmatprep.subr.mxu0 0.0
        %1875 = vmatpush1.msra.mxu0 %v407
        %1876 = vmatprep.subr.mxu0 0.0
        %1877 = vmatpush1.msra.mxu0 %v408
        %1878 = vmatprep.subr.mxu0 0.0
        %1879 = vmatpush1.msra.mxu0 %v409
        %1880 = vmatprep.subr.mxu0 0.0
        %1881 = vmatpush1.msra.mxu0 %v410
        %1882 = vmatprep.subr.mxu0 0.0
        %1883 = vmatpush1.msra.mxu0 %v411
        %1884 = vmatprep.subr.mxu0 0.0
        %1885 = vmatpush1.msra.mxu0 %v412
        %1886 = vmatprep.subr.mxu0 0.0
        %1887 = vmatpush1.msra.mxu0 %v413
        %1888 = vmatprep.subr.mxu0 0.0
        %1889 = vmatpush1.msra.mxu0 %v414
        %1890 = vmatprep.subr.mxu0 0.0
        %1891 = vmatpush1.msra.mxu0 %v415
        %1892 = vmatprep.subr.mxu0 0.0
        %1893 = vmatpush1.msra.mxu0 %v416
        %1894 = vmatprep.subr.mxu0 0.0
        %1895 = vmatpush1.msra.mxu0 %v417
        %1896 = vmatprep.subr.mxu0 0.0
        %1897 = vmatpush1.msra.mxu0 %v418
        %1898 = vmatprep.subr.mxu0 0.0
        %1899 = vmatpush1.msra.mxu0 %v419
        %1900 = vmatprep.subr.mxu0 0.0
        %1901 = vmatpush1.msra.mxu0 %v420
        %1902 = vmatprep.subr.mxu0 0.0
        %1903 = vmatpush1.msra.mxu0 0.0
        %1904 = vmatprep.subr.mxu0 0.0
        %1905 = vmatpush1.msra.mxu0 0.0
        %1906 = vmatprep.subr.mxu0 0.0
        %1907 = vmatpush1.msra.mxu0 0.0
        %1908 = vmatprep.subr.mxu0 0.0
        %1909 = vmatpush1.msra.mxu0 0.0
        %1910 = vmatprep.subr.mxu0 0.0
        %1911 = vmatpush1.msra.mxu0 0.0
        %1912 = vmatprep.subr.mxu0 0.0
        %1913 = vmatpush1.msra.mxu0 0.0
        %1914 = vmatprep.subr.mxu0 0.0
        %1915 = vmatpush1.msra.mxu0 0.0
        %1916 = vmatprep.subr.mxu0 0.0
        %1917 = vmatpush1.msra.mxu0 0.0
        %1918 = vmatprep.subr.mxu0 0.0
        %1919 = vmatpush1.msra.mxu0 0.0
        %1920 = vmatprep.subr.mxu0 0.0
        %1921 = vmatpush1.msra.mxu0 0.0
        %1922 = vmatprep.subr.mxu0 0.0
        %1923 = vmatpush1.msra.mxu0 0.0
        %1924 = vmatprep.subr.mxu0 0.0
        %1925 = vmatpush1.msra.mxu0 0.0
        %1926 = vmatprep.subr.mxu0 0.0
        %1927 = vmatpush1.msra.mxu0 0.0
        %1928 = vmatprep.subr.mxu0 0.0
        %1929 = vmatpush1.msra.mxu0 0.0
        %1930 = vmatprep.subr.mxu0 0.0
        %1931 = vmatpush1.msra.mxu0 0.0
        %1932 = vmatprep.subr.mxu0 0.0
        %1933 = vmatpush1.msra.mxu0 0.0
        %1934 = vmatprep.mubr.f32.mxu0 0.0
        %1935 = vmatmul.mubr.f32.gmra.mrb[0].mxu0 %v1854
        %v1936 = vpop.f32.mrb[0].mxu0
        %v1937 = vadd.f32 0.0, %v1936
        %v1938 = vpop.f32.mrb[0].mxu0
        %1939 = vmatprep.mubr.f32.mxu0 0.0
        %1940 = vmatmul.mubr.f32.gmra.mrb[0].mxu0 %v1855
        %v1941 = vpop.f32.mrb[0].mxu0
        %v1942 = vadd.f32 0.0, %v1941
        %v1943 = vpop.f32.mrb[0].mxu0
        %1944 = vmatprep.mubr.f32.mxu0 0.0
        %1945 = vmatmul.mubr.f32.gmra.mrb[0].mxu0 %v1856
        %v1946 = vpop.f32.mrb[0].mxu0
        %v1947 = vadd.f32 0.0, %v1946
        %v1948 = vpop.f32.mrb[0].mxu0
        %1949 = vmatprep.mubr.f32.mxu0 0.0
        %1950 = vmatmul.mubr.f32.gmra.mrb[0].mxu0 %v1857
        %v1951 = vpop.f32.mrb[0].mxu0
        %v1952 = vadd.f32 0.0, %v1951
        %v1953 = vpop.f32.mrb[0].mxu0
        %1954 = vmatprep.mubr.f32.mxu0 0.0
        %1955 = vmatmul.mubr.f32.gmra.mrb[0].mxu0 %v1858
        %v1956 = vpop.f32.mrb[0].mxu0
        %v1957 = vadd.f32 0.0, %v1956
        %v1958 = vpop.f32.mrb[0].mxu0
        %1959 = vmatprep.mubr.f32.mxu0 0.0
        %1960 = vmatmul.mubr.f32.gmra.mrb[0].mxu0 %v1859
        %v1961 = vpop.f32.mrb[0].mxu0
        %v1962 = vadd.f32 0.0, %v1961
        %v1963 = vpop.f32.mrb[0].mxu0
        %1964 = vmatprep.mubr.f32.mxu0 0.0
        %1965 = vmatmul.mubr.f32.gmra.mrb[0].mxu0 %v1860
        %v1966 = vpop.f32.mrb[0].mxu0
        %v1967 = vadd.f32 0.0, %v1966
        %v1968 = vpop.f32.mrb[0].mxu0
        %1969 = vmatprep.mubr.f32.mxu0 0.0
        %1970 = vmatmul.mubr.f32.gmra.mrb[0].mxu0 %v1861
        %v1971 = vpop.f32.mrb[0].mxu0
        %v1972 = vadd.f32 0.0, %v1971
        %v1973 = vpop.f32.mrb[0].mxu0
        %1974 = vmatprep.mubr.f32.mxu0 0.0
        %1975 = vmatmul.mubr.f32.gmra.mrb[0].mxu0 %v1862
        %v1976 = vpop.f32.mrb[0].mxu0
        %v1977 = vadd.f32 0.0, %v1976
        %v1978 = vpop.f32.mrb[0].mxu0
        %1979 = vmatprep.mubr.f32.mxu0 0.0
        %1980 = vmatmul.mubr.f32.gmra.mrb[0].mxu0 %v1863
        %v1981 = vpop.f32.mrb[0].mxu0
        %v1982 = vadd.f32 0.0, %v1981
        %v1983 = vpop.f32.mrb[0].mxu0
        %1984 = vmatprep.mubr.f32.mxu0 0.0
        %1985 = vmatmul.mubr.f32.gmra.mrb[0].mxu0 %v1864
        %v1986 = vpop.f32.mrb[0].mxu0
        %v1987 = vadd.f32 0.0, %v1986
        %v1988 = vpop.f32.mrb[0].mxu0
        %1989 = vmatprep.mubr.f32.mxu0 0.0
        %1990 = vmatmul.mubr.f32.gmra.mrb[0].mxu0 %v1865
        %v1991 = vpop.f32.mrb[0].mxu0
        %v1992 = vadd.f32 0.0, %v1991
        %v1993 = vpop.f32.mrb[0].mxu0
        %1994 = vmatprep.mubr.f32.mxu0 0.0
        %1995 = vmatmul.mubr.f32.gmra.mrb[0].mxu0 %v1866
        %v1996 = vpop.f32.mrb[0].mxu0
        %v1997 = vadd.f32 0.0, %v1996
        %v1998 = vpop.f32.mrb[0].mxu0
        %1999 = vmatprep.mubr.f32.mxu0 0.0
        %2000 = vmatmul.mubr.f32.gmra.mrb[0].mxu0 %v1867
        %v2001 = vpop.f32.mrb[0].mxu0
        %v2002 = vadd.f32 0.0, %v2001
        %v2003 = vpop.f32.mrb[0].mxu0
        %2004 = vmatprep.mubr.f32.mxu0 0.0
        %2005 = vmatmul.mubr.f32.gmra.mrb[0].mxu0 %v1868
        %v2006 = vpop.f32.mrb[0].mxu0
        %v2007 = vadd.f32 0.0, %v2006
        %v2008 = vpop.f32.mrb[0].mxu0
        %2009 = vmatprep.mubr.f32.mxu0 0.0
        %2010 = vmatmul.mubr.f32.gmra.mrb[0].mxu0 %v1869
        %v2011 = vpop.f32.mrb[0].mxu0
        %v2012 = vadd.f32 0.0, %v2011
        %v2013 = vpop.f32.mrb[0].mxu0
        %2014 = vdwg.mxu0
        %v2015 = vlaneseq
        %v2016 = vshrl.u32 %v2015, 7
        %v2017 = vsub.s32 4, %v2016
        %v2018 = vrot.slane %v825, %v2017
        %v2019 = vmul.f32 %v1937, %v2018
        %v2020 = vmul.f32 %v1942, %v2018
        %v2021 = vmul.f32 %v1947, %v2018
        %v2022 = vmul.f32 %v1952, %v2018
        %v2023 = vmul.f32 %v1957, %v2018
        %v2024 = vmul.f32 %v1962, %v2018
        %v2025 = vmul.f32 %v1967, %v2018
        %v2026 = vmul.f32 %v1972, %v2018
        %v2027 = vmul.f32 %v1977, %v2018
        %v2028 = vmul.f32 %v1982, %v2018
        %v2029 = vmul.f32 %v1987, %v2018
        %v2030 = vmul.f32 %v1992, %v2018
        %v2031 = vmul.f32 %v1997, %v2018
        %v2032 = vmul.f32 %v2002, %v2018
        %v2033 = vmul.f32 %v2007, %v2018
        %v2034 = vmul.f32 %v2012, %v2018
        %v2035 = vadd.f32 %v1790, %v2019
        %v2036 = vadd.f32 %v1791, %v2020
        %v2037 = vadd.f32 %v1792, %v2021
        %v2038 = vadd.f32 %v1793, %v2022
        %v2039 = vadd.f32 %v1794, %v2023
        %v2040 = vadd.f32 %v1795, %v2024
        %v2041 = vadd.f32 %v1796, %v2025
        %v2042 = vadd.f32 %v1797, %v2026
        %v2043 = vadd.f32 %v1798, %v2027
        %v2044 = vadd.f32 %v1799, %v2028
        %v2045 = vadd.f32 %v1800, %v2029
        %v2046 = vadd.f32 %v1801, %v2030
        %v2047 = vadd.f32 %v1802, %v2031
        %v2048 = vadd.f32 %v1803, %v2032
        %v2049 = vadd.f32 %v1804, %v2033
        %v2050 = vadd.f32 %v1805, %v2034
        %vm2051 = vcmp.eq.s32.totalorder %v809, 5
        %vm2052 = vcmp.eq.s32.totalorder %v810, 5
        %vm2053 = vcmp.eq.s32.totalorder %v811, 5
        %vm2054 = vcmp.eq.s32.totalorder %v812, 5
        %vm2055 = vcmp.eq.s32.totalorder %v813, 5
        %vm2056 = vcmp.eq.s32.totalorder %v814, 5
        %vm2057 = vcmp.eq.s32.totalorder %v815, 5
        %vm2058 = vcmp.eq.s32.totalorder %v816, 5
        %vm2059 = vcmp.eq.s32.totalorder %v817, 5
        %vm2060 = vcmp.eq.s32.totalorder %v818, 5
        %vm2061 = vcmp.eq.s32.totalorder %v819, 5
        %vm2062 = vcmp.eq.s32.totalorder %v820, 5
        %vm2063 = vcmp.eq.s32.totalorder %v821, 5
        %vm2064 = vcmp.eq.s32.totalorder %v822, 5
        %vm2065 = vcmp.eq.s32.totalorder %v823, 5
        %vm2066 = vcmp.eq.s32.totalorder %v824, 5
        %v2067 = vsel %vm2051, 1, 0
        %v2068 = vsel %vm2052, 1, 0
        %v2069 = vsel %vm2053, 1, 0
        %v2070 = vsel %vm2054, 1, 0
        %v2071 = vsel %vm2055, 1, 0
        %v2072 = vsel %vm2056, 1, 0
        %v2073 = vsel %vm2057, 1, 0
        %v2074 = vsel %vm2058, 1, 0
        %v2075 = vsel %vm2059, 1, 0
        %v2076 = vsel %vm2060, 1, 0
        %v2077 = vsel %vm2061, 1, 0
        %v2078 = vsel %vm2062, 1, 0
        %v2079 = vsel %vm2063, 1, 0
        %v2080 = vsel %vm2064, 1, 0
        %v2081 = vsel %vm2065, 1, 0
        %v2082 = vsel %vm2066, 1, 0
        %v2083 = vcvt.s32.f32 %v2067
        %v2084 = vcvt.s32.f32 %v2068
        %v2085 = vcvt.s32.f32 %v2069
        %v2086 = vcvt.s32.f32 %v2070
        %v2087 = vcvt.s32.f32 %v2071
        %v2088 = vcvt.s32.f32 %v2072
        %v2089 = vcvt.s32.f32 %v2073
        %v2090 = vcvt.s32.f32 %v2074
        %v2091 = vcvt.s32.f32 %v2075
        %v2092 = vcvt.s32.f32 %v2076
        %v2093 = vcvt.s32.f32 %v2077
        %v2094 = vcvt.s32.f32 %v2078
        %v2095 = vcvt.s32.f32 %v2079
        %v2096 = vcvt.s32.f32 %v2080
        %v2097 = vcvt.s32.f32 %v2081
        %v2098 = vcvt.s32.f32 %v2082
        %v2099 = vmul.f32 %v777, %v2083
        %v2100 = vmul.f32 %v778, %v2084
        %v2101 = vmul.f32 %v779, %v2085
        %v2102 = vmul.f32 %v780, %v2086
        %v2103 = vmul.f32 %v781, %v2087
        %v2104 = vmul.f32 %v782, %v2088
        %v2105 = vmul.f32 %v783, %v2089
        %v2106 = vmul.f32 %v784, %v2090
        %v2107 = vmul.f32 %v785, %v2091
        %v2108 = vmul.f32 %v786, %v2092
        %v2109 = vmul.f32 %v787, %v2093
        %v2110 = vmul.f32 %v788, %v2094
        %v2111 = vmul.f32 %v789, %v2095
        %v2112 = vmul.f32 %v790, %v2096
        %v2113 = vmul.f32 %v791, %v2097
        %v2114 = vmul.f32 %v792, %v2098
        %2115 = vmatprep.subr.mxu0 0.0
        %2116 = vmatpush1.msra.mxu0 %v405
        %2117 = vmatprep.subr.mxu0 0.0
        %2118 = vmatpush1.msra.mxu0 %v406
        %2119 = vmatprep.subr.mxu0 0.0
        %2120 = vmatpush1.msra.mxu0 %v407
        %2121 = vmatprep.subr.mxu0 0.0
        %2122 = vmatpush1.msra.mxu0 %v408
        %2123 = vmatprep.subr.mxu0 0.0
        %2124 = vmatpush1.msra.mxu0 %v409
        %2125 = vmatprep.subr.mxu0 0.0
        %2126 = vmatpush1.msra.mxu0 %v410
        %2127 = vmatprep.subr.mxu0 0.0
        %2128 = vmatpush1.msra.mxu0 %v411
        %2129 = vmatprep.subr.mxu0 0.0
        %2130 = vmatpush1.msra.mxu0 %v412
        %2131 = vmatprep.subr.mxu0 0.0
        %2132 = vmatpush1.msra.mxu0 %v413
        %2133 = vmatprep.subr.mxu0 0.0
        %2134 = vmatpush1.msra.mxu0 %v414
        %2135 = vmatprep.subr.mxu0 0.0
        %2136 = vmatpush1.msra.mxu0 %v415
        %2137 = vmatprep.subr.mxu0 0.0
        %2138 = vmatpush1.msra.mxu0 %v416
        %2139 = vmatprep.subr.mxu0 0.0
        %2140 = vmatpush1.msra.mxu0 %v417
        %2141 = vmatprep.subr.mxu0 0.0
        %2142 = vmatpush1.msra.mxu0 %v418
        %2143 = vmatprep.subr.mxu0 0.0
        %2144 = vmatpush1.msra.mxu0 %v419
        %2145 = vmatprep.subr.mxu0 0.0
        %2146 = vmatpush1.msra.mxu0 %v420
        %2147 = vmatprep.subr.mxu0 0.0
        %2148 = vmatpush1.msra.mxu0 0.0
        %2149 = vmatprep.subr.mxu0 0.0
        %2150 = vmatpush1.msra.mxu0 0.0
        %2151 = vmatprep.subr.mxu0 0.0
        %2152 = vmatpush1.msra.mxu0 0.0
        %2153 = vmatprep.subr.mxu0 0.0
        %2154 = vmatpush1.msra.mxu0 0.0
        %2155 = vmatprep.subr.mxu0 0.0
        %2156 = vmatpush1.msra.mxu0 0.0
        %2157 = vmatprep.subr.mxu0 0.0
        %2158 = vmatpush1.msra.mxu0 0.0
        %2159 = vmatprep.subr.mxu0 0.0
        %2160 = vmatpush1.msra.mxu0 0.0
        %2161 = vmatprep.subr.mxu0 0.0
        %2162 = vmatpush1.msra.mxu0 0.0
        %2163 = vmatprep.subr.mxu0 0.0
        %2164 = vmatpush1.msra.mxu0 0.0
        %2165 = vmatprep.subr.mxu0 0.0
        %2166 = vmatpush1.msra.mxu0 0.0
        %2167 = vmatprep.subr.mxu0 0.0
        %2168 = vmatpush1.msra.mxu0 0.0
        %2169 = vmatprep.subr.mxu0 0.0
        %2170 = vmatpush1.msra.mxu0 0.0
        %2171 = vmatprep.subr.mxu0 0.0
        %2172 = vmatpush1.msra.mxu0 0.0
        %2173 = vmatprep.subr.mxu0 0.0
        %2174 = vmatpush1.msra.mxu0 0.0
        %2175 = vmatprep.subr.mxu0 0.0
        %2176 = vmatpush1.msra.mxu0 0.0
        %2177 = vmatprep.subr.mxu0 0.0
        %2178 = vmatpush1.msra.mxu0 0.0
        %2179 = vmatprep.mubr.f32.mxu0 0.0
        %2180 = vmatmul.mubr.f32.gmra.mrb[0].mxu0 %v2099
        %v2181 = vpop.f32.mrb[0].mxu0
        %v2182 = vadd.f32 0.0, %v2181
        %v2183 = vpop.f32.mrb[0].mxu0
        %2184 = vmatprep.mubr.f32.mxu0 0.0
        %2185 = vmatmul.mubr.f32.gmra.mrb[0].mxu0 %v2100
        %v2186 = vpop.f32.mrb[0].mxu0
        %v2187 = vadd.f32 0.0, %v2186
        %v2188 = vpop.f32.mrb[0].mxu0
        %2189 = vmatprep.mubr.f32.mxu0 0.0
        %2190 = vmatmul.mubr.f32.gmra.mrb[0].mxu0 %v2101
        %v2191 = vpop.f32.mrb[0].mxu0
        %v2192 = vadd.f32 0.0, %v2191
        %v2193 = vpop.f32.mrb[0].mxu0
        %2194 = vmatprep.mubr.f32.mxu0 0.0
        %2195 = vmatmul.mubr.f32.gmra.mrb[0].mxu0 %v2102
        %v2196 = vpop.f32.mrb[0].mxu0
        %v2197 = vadd.f32 0.0, %v2196
        %v2198 = vpop.f32.mrb[0].mxu0
        %2199 = vmatprep.mubr.f32.mxu0 0.0
        %2200 = vmatmul.mubr.f32.gmra.mrb[0].mxu0 %v2103
        %v2201 = vpop.f32.mrb[0].mxu0
        %v2202 = vadd.f32 0.0, %v2201
        %v2203 = vpop.f32.mrb[0].mxu0
        %2204 = vmatprep.mubr.f32.mxu0 0.0
        %2205 = vmatmul.mubr.f32.gmra.mrb[0].mxu0 %v2104
        %v2206 = vpop.f32.mrb[0].mxu0
        %v2207 = vadd.f32 0.0, %v2206
        %v2208 = vpop.f32.mrb[0].mxu0
        %2209 = vmatprep.mubr.f32.mxu0 0.0
        %2210 = vmatmul.mubr.f32.gmra.mrb[0].mxu0 %v2105
        %v2211 = vpop.f32.mrb[0].mxu0
        %v2212 = vadd.f32 0.0, %v2211
        %v2213 = vpop.f32.mrb[0].mxu0
        %2214 = vmatprep.mubr.f32.mxu0 0.0
        %2215 = vmatmul.mubr.f32.gmra.mrb[0].mxu0 %v2106
        %v2216 = vpop.f32.mrb[0].mxu0
        %v2217 = vadd.f32 0.0, %v2216
        %v2218 = vpop.f32.mrb[0].mxu0
        %2219 = vmatprep.mubr.f32.mxu0 0.0
        %2220 = vmatmul.mubr.f32.gmra.mrb[0].mxu0 %v2107
        %v2221 = vpop.f32.mrb[0].mxu0
        %v2222 = vadd.f32 0.0, %v2221
        %v2223 = vpop.f32.mrb[0].mxu0
        %2224 = vmatprep.mubr.f32.mxu0 0.0
        %2225 = vmatmul.mubr.f32.gmra.mrb[0].mxu0 %v2108
        %v2226 = vpop.f32.mrb[0].mxu0
        %v2227 = vadd.f32 0.0, %v2226
        %v2228 = vpop.f32.mrb[0].mxu0
        %2229 = vmatprep.mubr.f32.mxu0 0.0
        %2230 = vmatmul.mubr.f32.gmra.mrb[0].mxu0 %v2109
        %v2231 = vpop.f32.mrb[0].mxu0
        %v2232 = vadd.f32 0.0, %v2231
        %v2233 = vpop.f32.mrb[0].mxu0
        %2234 = vmatprep.mubr.f32.mxu0 0.0
        %2235 = vmatmul.mubr.f32.gmra.mrb[0].mxu0 %v2110
        %v2236 = vpop.f32.mrb[0].mxu0
        %v2237 = vadd.f32 0.0, %v2236
        %v2238 = vpop.f32.mrb[0].mxu0
        %2239 = vmatprep.mubr.f32.mxu0 0.0
        %2240 = vmatmul.mubr.f32.gmra.mrb[0].mxu0 %v2111
        %v2241 = vpop.f32.mrb[0].mxu0
        %v2242 = vadd.f32 0.0, %v2241
        %v2243 = vpop.f32.mrb[0].mxu0
        %2244 = vmatprep.mubr.f32.mxu0 0.0
        %2245 = vmatmul.mubr.f32.gmra.mrb[0].mxu0 %v2112
        %v2246 = vpop.f32.mrb[0].mxu0
        %v2247 = vadd.f32 0.0, %v2246
        %v2248 = vpop.f32.mrb[0].mxu0
        %2249 = vmatprep.mubr.f32.mxu0 0.0
        %2250 = vmatmul.mubr.f32.gmra.mrb[0].mxu0 %v2113
        %v2251 = vpop.f32.mrb[0].mxu0
        %v2252 = vadd.f32 0.0, %v2251
        %v2253 = vpop.f32.mrb[0].mxu0
        %2254 = vmatprep.mubr.f32.mxu0 0.0
        %2255 = vmatmul.mubr.f32.gmra.mrb[0].mxu0 %v2114
        %v2256 = vpop.f32.mrb[0].mxu0
        %v2257 = vadd.f32 0.0, %v2256
        %v2258 = vpop.f32.mrb[0].mxu0
        %2259 = vdwg.mxu0
        %v2260 = vlaneseq
        %v2261 = vshrl.u32 %v2260, 7
        %v2262 = vsub.s32 5, %v2261
        %v2263 = vrot.slane %v825, %v2262
        %v2264 = vmul.f32 %v2182, %v2263
        %v2265 = vmul.f32 %v2187, %v2263
        %v2266 = vmul.f32 %v2192, %v2263
        %v2267 = vmul.f32 %v2197, %v2263
        %v2268 = vmul.f32 %v2202, %v2263
        %v2269 = vmul.f32 %v2207, %v2263
        %v2270 = vmul.f32 %v2212, %v2263
        %v2271 = vmul.f32 %v2217, %v2263
        %v2272 = vmul.f32 %v2222, %v2263
        %v2273 = vmul.f32 %v2227, %v2263
        %v2274 = vmul.f32 %v2232, %v2263
        %v2275 = vmul.f32 %v2237, %v2263
        %v2276 = vmul.f32 %v2242, %v2263
        %v2277 = vmul.f32 %v2247, %v2263
        %v2278 = vmul.f32 %v2252, %v2263
        %v2279 = vmul.f32 %v2257, %v2263
        %v2280 = vadd.f32 %v2035, %v2264
        %v2281 = vadd.f32 %v2036, %v2265
        %v2282 = vadd.f32 %v2037, %v2266
        %v2283 = vadd.f32 %v2038, %v2267
        %v2284 = vadd.f32 %v2039, %v2268
        %v2285 = vadd.f32 %v2040, %v2269
        %v2286 = vadd.f32 %v2041, %v2270
        %v2287 = vadd.f32 %v2042, %v2271
        %v2288 = vadd.f32 %v2043, %v2272
        %v2289 = vadd.f32 %v2044, %v2273
        %v2290 = vadd.f32 %v2045, %v2274
        %v2291 = vadd.f32 %v2046, %v2275
        %v2292 = vadd.f32 %v2047, %v2276
        %v2293 = vadd.f32 %v2048, %v2277
        %v2294 = vadd.f32 %v2049, %v2278
        %v2295 = vadd.f32 %v2050, %v2279
        %2296 = vst [vmem:[%s365] sm:$0xff] %v2280
        %2297 = vst [vmem:[%s365 + $0x8] sm:$0xff] %v2281
        %2298 = vst [vmem:[%s365 + $0x10] sm:$0xff] %v2282
        %2299 = vst [vmem:[%s365 + $0x18] sm:$0xff] %v2283
        %2300 = vst [vmem:[%s365 + $0x20] sm:$0xff] %v2284
        %2301 = vst [vmem:[%s365 + $0x28] sm:$0xff] %v2285
        %2302 = vst [vmem:[%s365 + $0x30] sm:$0xff] %v2286
        %2303 = vst [vmem:[%s365 + $0x38] sm:$0xff] %v2287
        %2304 = vst [vmem:[%s365 + $0x40] sm:$0xff] %v2288
        %2305 = vst [vmem:[%s365 + $0x48] sm:$0xff] %v2289
        %2306 = vst [vmem:[%s365 + $0x50] sm:$0xff] %v2290
        %2307 = vst [vmem:[%s365 + $0x58] sm:$0xff] %v2291
        %2308 = vst [vmem:[%s365 + $0x60] sm:$0xff] %v2292
        %2309 = vst [vmem:[%s365 + $0x68] sm:$0xff] %v2293
        %2310 = vst [vmem:[%s365 + $0x70] sm:$0xff] %v2294
        %2311 = vst [vmem:[%s365 + $0x78] sm:$0xff] %v2295
        %s2312 = sand.u32 %s159, 1
        %s2313 = scalar_lea.sflag [#allocation4], %s2312
        %s2314 = sand.u32 %s159, 1
        %s2315 = smul.addr %s2314, 128
        %s2316 = scalar_lea.vmem [#allocation10], %s2315
        %s2317 = sand.u32 %s185, 1
        %s2318 = scalar_lea.sflag [#allocation12], %s2317
        %s2319 = sand.u32 %s185, 1
        %s2320 = smul.addr %s2319, 128
        %s2321 = scalar_lea.vmem [#allocation11], %s2320
        // Predicated region
        $region57: #{tpu_custom_call.1} parent=39 // pred_check
          %p2322 = pneg %p169
        $region58: #{tpu_custom_call.1} parent=39 // pred_check_branch
          %2324 = sbr.rel (%p2322) target = $region60
        $region59: #{tpu_custom_call.1} parent=39 // pred_region
          %s2326 = ssub.s32 2048, 2048
          %2327 = vsyncadd %s2313, %s2326
          %s2328 = smul.addr %s31, 16
          %s2329 = smul.addr %s2328, 128
          %s2330 = scalar_lea.hbm %s5, %s2329
          %s2331 = sshll.u32 %s2316, 4
          %s2332 = int_to_ptr.vmem [resolvable:$true] %s2331
          %2337 = dma.vmem_to_hbm [thread:$0]  %s2332, 2048, %s2330, %s2313, 128, 128, 8
        $region60: #{tpu_custom_call.1} parent=39 // pred_fallthru
          _
        // Predicated region
        $region61: #{tpu_custom_call.1} parent=39 // pred_check
          %p2338 = pneg %p195
        $region62: #{tpu_custom_call.1} parent=39 // pred_check_branch
          %2340 = sbr.rel (%p2338) target = $region64
        $region63: #{tpu_custom_call.1} parent=39 // pred_region
          %s2342 = ssub.s32 2048, 2048
          %2343 = vsyncadd %s2318, %s2342
          %s2344 = smul.addr %s31, 16
          %s2345 = smul.addr %s2344, 128
          %s2346 = scalar_lea.hbm %s6, %s2345
          %s2347 = sshll.u32 %s2321, 4
          %s2348 = int_to_ptr.vmem [resolvable:$true] %s2347
          %2353 = dma.vmem_to_hbm [thread:$0]  %s2348, 2048, %s2346, %s2318, 128, 128, 8
        $region64: #{tpu_custom_call.1} parent=39 // pred_fallthru
          _
      $region40: #{tpu_custom_call.1} parent=5 // pred_fallthru
        _
      %p2354 = scmp.le.s32.totalorder 2, %s26
      // Predicated region
      $region65: #{tpu_custom_call.1} parent=5 // pred_check
        %p2355 = pneg %p2354
      $region66: #{tpu_custom_call.1} parent=5 // pred_check_branch
        %2357 = sbr.rel (%p2355) target = $region68
      $region67: #{tpu_custom_call.1} parent=5 // pred_region
        %s2358 = ssub.s32 %s26, 2
        // Predicated region
        $region69: #{tpu_custom_call.1} parent=67 // pred_check
          %p2359 = pneg %p175
        $region70: #{tpu_custom_call.1} parent=67 // pred_check_branch
          %2361 = sbr.rel (%p2359) target = $region72
        $region71: #{tpu_custom_call.1} parent=67 // pred_region
          %s2362 = sand.u32 %s160, 1
          %s2363 = scalar_lea.sflag [#allocation4], %s2362
          %s2364 = sand.u32 %s160, 1
          %s2365 = smul.addr %s2364, 128
          %s2366 = scalar_lea.vmem [#allocation10], %s2365
          %2367 = dma.done %s2363, 2048
        $region72: #{tpu_custom_call.1} parent=67 // pred_fallthru
          _
        // Predicated region
        $region73: #{tpu_custom_call.1} parent=67 // pred_check
          %p2368 = pneg %p201
        $region74: #{tpu_custom_call.1} parent=67 // pred_check_branch
          %2370 = sbr.rel (%p2368) target = $region76
        $region75: #{tpu_custom_call.1} parent=67 // pred_region
          %s2371 = sand.u32 %s186, 1
          %s2372 = scalar_lea.sflag [#allocation12], %s2371
          %s2373 = sand.u32 %s186, 1
          %s2374 = smul.addr %s2373, 128
          %s2375 = scalar_lea.vmem [#allocation11], %s2374
          %2376 = dma.done %s2372, 2048
        $region76: #{tpu_custom_call.1} parent=67 // pred_fallthru
          _
      $region68: #{tpu_custom_call.1} parent=5 // pred_fallthru
        _
    $region6: #{tpu_custom_call.1} parent=1 // loop_footer
      %s30 = sadd.s32 1, %s26
    $region7: #{tpu_custom_call.1} parent=1 // loop_footer_branch
      %25 = sbr.rel target = $region3
    $region8: #{tpu_custom_call.1} parent=1 // loop_exit
      _
    %2377 = vsyncpa [#allocation3], 1
    %s2378 = scalar_lea.sflag [#allocation3], 1
    %2379 = vsyncpa %s2378, 1
    %2380 = vsyncpa [#allocation6], 1
    %s2381 = scalar_lea.sflag [#allocation6], 1
    %2382 = vsyncpa %s2381, 1
    %2383 = vsyncpa [#allocation9], 1
    %2384 = vsyncpa [#allocation4], 1
    %s2385 = scalar_lea.sflag [#allocation4], 1
    %2386 = vsyncpa %s2385, 1
    %2387 = vsyncpa [#allocation12], 1
    %s2388 = scalar_lea.sflag [#allocation12], 1
    %2389 = vsyncpa %s2388, 1

</llo_original>
